<compile_context>
chip_gen: v5e
topology: v5e:2x2
jax: 0.10.0
libtpu: 0.0.40
codegen_flags: <defaults>
</compile_context>

<pallas_src>
import functools
import math

import jax
import jax.numpy as jnp
from jax.experimental import pallas as pl
from jax.experimental.pallas import tpu as pltpu

LN_EPS = 1e-5
NEG_INF = -1e30
VMEM_LIMIT = 64 * 1024 * 1024


# --------------------------------------------------------------------------
# Small helpers
# --------------------------------------------------------------------------
def _divisor_tile(n, max_tile):
    """Largest t <= max_tile with t % 8 == 0 and n % t == 0; falls back to n."""
    t = (min(n, max_tile) // 8) * 8
    while t >= 8:
        if n % t == 0:
            return t
        t -= 8
    return n


def _pad_rows(x, mult=8):
    n = x.shape[0]
    n_pad = -(-n // mult) * mult
    if n_pad != n:
        x = jnp.pad(x, ((0, n_pad - n), (0, 0)))
    return x, n


def _layernorm(x, g, b):
    mean = jnp.mean(x, axis=-1, keepdims=True)
    var = jnp.mean((x - mean) ** 2, axis=-1, keepdims=True)
    return (x - mean) * jax.lax.rsqrt(var + LN_EPS) * g + b


def _cparams(*sems):
    return pltpu.CompilerParams(dimension_semantics=sems,
                                vmem_limit_bytes=VMEM_LIMIT)


# --------------------------------------------------------------------------
# Pallas kernels
# --------------------------------------------------------------------------
def _linear_kernel(x_ref, w_ref, b_ref, o_ref):
    o_ref[...] = (
        jnp.dot(x_ref[...], w_ref[...], preferred_element_type=jnp.float32)
        + b_ref[...]
    ).astype(o_ref.dtype)


def _ffn_kernel(x_ref, w1_ref, b1_ref, w2_ref, b2_ref, g_ref, b_ref, o_ref):
    """Fused Linear -> exact GELU -> Linear -> residual add -> LayerNorm."""
    # TODO(synk): for realistic d_ff on v7x, block the hidden dim with an
    # extra 'arbitrary' grid axis + VMEM accumulator to fit 64 MiB VMEM.
    x = x_ref[...].astype(jnp.float32)
    h = jnp.dot(x, w1_ref[...], preferred_element_type=jnp.float32) + b1_ref[...]
    h = 0.5 * h * (1.0 + jax.lax.erf(h * 0.7071067811865476))  # exact GELU
    f = jnp.dot(h, w2_ref[...], preferred_element_type=jnp.float32) + b2_ref[...]
    o_ref[...] = _layernorm(x + f, g_ref[...], b_ref[...]).astype(o_ref.dtype)


def _attn_kernel(len_ref, xq_ref, xkv_ref, wq_ref, bq_ref, wkv_ref, bkv_ref,
                 wo_ref, bo_ref, png_ref, pnb_ref, g_ref, b_ref,
                 o_ref, attn_ref, *, num_heads, causal, prenorm):
    """Fully-fused MHA block for one (batch, q-block) grid point.

    Does (optionally) pre-LayerNorm on the query/key inputs, Q and K/V
    projections (1/sqrt(Dh) pre-folded into wq/bq), in-kernel causal +
    key-padding mask from SMEM lengths, per-head softmax attention, one
    full-depth output projection, residual add and post-LayerNorm.
    Also emits head-averaged attention probabilities.
    """
    D = xq_ref.shape[-1]
    Dh = D // num_heads
    tq = xq_ref.shape[1]
    Lk = xkv_ref.shape[1]
    b = pl.program_id(0)
    q_start = pl.program_id(1) * tq

    # ----- queries (and the residual branch) -----
    xq = xq_ref[0].astype(jnp.float32)                          # (tq, D)
    if prenorm:
        xq_n = _layernorm(xq, png_ref[...], pnb_ref[...])
    else:
        xq_n = xq
    q = jnp.dot(xq_n, wq_ref[...], preferred_element_type=jnp.float32) + bq_ref[...]

    # ----- keys / values -----
    xkv = xkv_ref[0].astype(jnp.float32)                        # (Lk, D)
    if prenorm:
        xkv_n = _layernorm(xkv, png_ref[...], pnb_ref[...])
    else:
        xkv_n = xkv
    kv = jnp.dot(xkv_n, wkv_ref[...], preferred_element_type=jnp.float32) + bkv_ref[...]
    k = kv[:, :D]
    v = kv[:, D:]

    # ----- mask built in-kernel (no HBM bias tensor) -----
    klen = len_ref[b]
    row = jax.lax.broadcasted_iota(jnp.int32, (tq, Lk), 0) + q_start
    col = jax.lax.broadcasted_iota(jnp.int32, (tq, Lk), 1)
    masked = col >= klen
    if causal:
        masked = jnp.logical_or(masked, col > row)
    bias = jnp.where(masked, jnp.float32(NEG_INF), jnp.float32(0.0))

    # ----- per-head attention (static lane slices), single out-proj matmul -----
    attn_acc = jnp.zeros((tq, Lk), jnp.float32)
    ctx_heads = []
    for h in range(num_heads):
        qh = q[:, h * Dh:(h + 1) * Dh]
        kh = k[:, h * Dh:(h + 1) * Dh]
        vh = v[:, h * Dh:(h + 1) * Dh]
        s = jax.lax.dot_general(qh, kh, (((1,), (1,)), ((), ())),
                                preferred_element_type=jnp.float32) + bias
        m = jnp.max(s, axis=-1, keepdims=True)
        e = jnp.exp(s - m)
        denom = jnp.sum(e, axis=-1, keepdims=True)
        p = e * pl.reciprocal(denom, approx=True)               # EUP divide
        attn_acc = attn_acc + p
        ctx_heads.append(jnp.dot(p, vh, preferred_element_type=jnp.float32))
    ctx = jnp.concatenate(ctx_heads, axis=-1)                   # (tq, D)
    out = jnp.dot(ctx, wo_ref[...], preferred_element_type=jnp.float32) + bo_ref[...]

    o_ref[0] = _layernorm(xq_n + out, g_ref[...], b_ref[...]).astype(o_ref.dtype)
    attn_ref[0] = (attn_acc * (1.0 / num_heads)).astype(attn_ref.dtype)


# --------------------------------------------------------------------------
# Kernel wrappers
# --------------------------------------------------------------------------
def pallas_linear(x, w, b):
    """x: (N, Din), w: (Din, Dout), b: (Dout,) -> (N, Dout)."""
    x, n = _pad_rows(x)
    n_pad, din = x.shape
    dout = w.shape[1]
    tn = _divisor_tile(n_pad, 512)
    out = pl.pallas_call(
        _linear_kernel,
        out_shape=jax.ShapeDtypeStruct((n_pad, dout), jnp.float32),
        grid=(n_pad // tn,),
        in_specs=[pl.BlockSpec((tn, din), lambda i: (i, 0)),
                  pl.BlockSpec((din, dout), lambda i: (0, 0)),
                  pl.BlockSpec((1, dout), lambda i: (0, 0))],
        out_specs=pl.BlockSpec((tn, dout), lambda i: (i, 0)),
        compiler_params=_cparams("parallel"),
    )(x, w, b.reshape(1, dout))
    return out[:n] if n_pad != n else out


def pallas_ffn(x, w1, b1, w2, b2, g, bln):
    """x: (N, D) -> layernorm(x + FFN(x)), fused."""
    x, n = _pad_rows(x)
    n_pad, d = x.shape
    dff = w1.shape[1]
    tn = _divisor_tile(n_pad, 512)
    out = pl.pallas_call(
        _ffn_kernel,
        out_shape=jax.ShapeDtypeStruct((n_pad, d), jnp.float32),
        grid=(n_pad // tn,),
        in_specs=[pl.BlockSpec((tn, d), lambda i: (i, 0)),
                  pl.BlockSpec((d, dff), lambda i: (0, 0)),
                  pl.BlockSpec((1, dff), lambda i: (0, 0)),
                  pl.BlockSpec((dff, d), lambda i: (0, 0)),
                  pl.BlockSpec((1, d), lambda i: (0, 0)),
                  pl.BlockSpec((1, d), lambda i: (0, 0)),
                  pl.BlockSpec((1, d), lambda i: (0, 0))],
        out_specs=pl.BlockSpec((tn, d), lambda i: (i, 0)),
        compiler_params=_cparams("parallel"),
    )(x, w1, b1.reshape(1, dff), w2, b2.reshape(1, d),
      g.reshape(1, d), bln.reshape(1, d))
    return out[:n] if n_pad != n else out


def pallas_attention(xq, x_kv, lengths, wq, bq, wkv, bkv, wo, bo,
                     png, pnb, g, b, num_heads, *, causal, prenorm):
    """Fused MHA block.

    xq: (B, Lq, D) query-side input (also the residual branch after optional
        pre-norm); x_kv: (B, Lk, D) key/value-side input (pre-projection);
    lengths: (B,) int32 valid key lengths (key-padding mask built in-kernel).
    Returns (x_out (B, Lq, D), attn (B, Lq, Lk))."""
    B, Lq, D = xq.shape
    Lk = x_kv.shape[1]
    tq = _divisor_tile(Lq, 256)
    kernel = functools.partial(_attn_kernel, num_heads=num_heads,
                               causal=causal, prenorm=prenorm)

    grid_spec = pltpu.PrefetchScalarGridSpec(
        num_scalar_prefetch=1,
        grid=(B, Lq // tq),
        in_specs=[
            pl.BlockSpec((1, tq, D), lambda bi, qi, lens: (bi, qi, 0)),   # xq
            pl.BlockSpec((1, Lk, D), lambda bi, qi, lens: (bi, 0, 0)),    # x_kv
            pl.BlockSpec((D, D), lambda bi, qi, lens: (0, 0)),            # wq
            pl.BlockSpec((1, D), lambda bi, qi, lens: (0, 0)),            # bq
            pl.BlockSpec((D, 2 * D), lambda bi, qi, lens: (0, 0)),        # wkv
            pl.BlockSpec((1, 2 * D), lambda bi, qi, lens: (0, 0)),        # bkv
            pl.BlockSpec((D, D), lambda bi, qi, lens: (0, 0)),            # wo
            pl.BlockSpec((1, D), lambda bi, qi, lens: (0, 0)),            # bo
            pl.BlockSpec((1, D), lambda bi, qi, lens: (0, 0)),            # pre_norm g
            pl.BlockSpec((1, D), lambda bi, qi, lens: (0, 0)),            # pre_norm b
            pl.BlockSpec((1, D), lambda bi, qi, lens: (0, 0)),            # post LN g
            pl.BlockSpec((1, D), lambda bi, qi, lens: (0, 0)),            # post LN b
        ],
        out_specs=(pl.BlockSpec((1, tq, D), lambda bi, qi, lens: (bi, qi, 0)),
                   pl.BlockSpec((1, tq, Lk), lambda bi, qi, lens: (bi, qi, 0))),
    )
    return pl.pallas_call(
        kernel,
        out_shape=(jax.ShapeDtypeStruct((B, Lq, D), jnp.float32),
                   jax.ShapeDtypeStruct((B, Lq, Lk), jnp.float32)),
        grid_spec=grid_spec,
        compiler_params=_cparams("parallel", "parallel"),
    )(lengths.astype(jnp.int32), xq, x_kv,
      wq, bq.reshape(1, D), wkv, bkv.reshape(1, 2 * D),
      wo, bo.reshape(1, D), png.reshape(1, D), pnb.reshape(1, D),
      g.reshape(1, D), b.reshape(1, D))


# --------------------------------------------------------------------------
# Model glue (layer orchestration)
# --------------------------------------------------------------------------
def decoder_layer(p, x, enc_output, target_lengths, enc_input_lengths, num_heads):
    B, T, D = x.shape
    scale = 1.0 / math.sqrt(D // num_heads)

    # --- fused masked self-attention (pre_norm + QKV + MHA + out-proj + LN1) ---
    x1, attn1 = pallas_attention(
        x, x, target_lengths,
        p["mha1"]["wq"] * scale, p["mha1"]["bq"] * scale,   # 1/sqrt(Dh) folded
        p["mha1"]["wkv"], p["mha1"]["bkv"],
        p["mha1"]["wo"], p["mha1"]["bo"],
        p["pre_norm_g"], p["pre_norm_b"], p["ln1_g"], p["ln1_b"],
        num_heads, causal=True, prenorm=True)

    if enc_output is None:
        # reference: mha2_output = identity(padded_targets) == un-normalized layer input
        x2 = x
        attn2 = jnp.zeros_like(attn1)
    else:
        # --- fused cross-attention (K/V proj of enc_output done in-kernel) ---
        x2, attn2 = pallas_attention(
            x1, enc_output, enc_input_lengths,
            p["mha2"]["wq"] * scale, p["mha2"]["bq"] * scale,
            p["mha2"]["wkv"], p["mha2"]["bkv"],
            p["mha2"]["wo"], p["mha2"]["bo"],
            p["pre_norm_g"], p["pre_norm_b"],               # unused (prenorm=False)
            p["ln2_g"], p["ln2_b"],
            num_heads, causal=False, prenorm=False)

    # --- fused FFN + residual + layernorm3 ---
    out = pallas_ffn(
        x2.reshape(B * T, D), p["ffn_w1"], p["ffn_b1"], p["ffn_w2"], p["ffn_b2"],
        p["ln3_g"], p["ln3_b"]).reshape(B, T, D)
    return out, attn1, attn2


def sinusoidal_positional_encoding(max_len, d_model):
    pos = jnp.arange(max_len, dtype=jnp.float32)[:, None]
    div = jnp.exp(
        jnp.arange(0, d_model, 2, dtype=jnp.float32) * (-math.log(10000.0) / d_model)
    )
    pe = jnp.zeros((max_len, d_model), jnp.float32)
    pe = pe.at[:, 0::2].set(jnp.sin(pos * div))
    pe = pe.at[:, 1::2].set(jnp.cos(pos * div))
    return pe


def decoder_forward(params, cfg, padded_targets, target_lengths, enc_output,
                    enc_input_lengths):
    B, T = padded_targets.shape
    D = cfg["d_model"]
    H = cfg["num_heads"]
    V = cfg["target_vocab_size"]

    # key lengths for the self-attention key-padding mask (None -> no padding)
    if target_lengths is None:
        tgt_lens = jnp.full((B,), T, dtype=jnp.int32)
    else:
        tgt_lens = jnp.asarray(target_lengths, jnp.int32)
    enc_lens = None
    if enc_output is not None:
        enc_lens = jnp.asarray(enc_input_lengths, jnp.int32)

    # embedding + positional encoding (+ dropout == identity in eval)
    # TODO(synk): embedding gather + PE add kept in XLA (no natural Pallas win).
    x = params["embedding"][padded_targets]          # (B, T, D)
    x = x + params["pos_encoding"][:T][None, :, :]

    running_att = {}
    for i, layer_p in enumerate(params["layers"]):
        x, a_self, a_cross = decoder_layer(
            layer_p, x, enc_output, tgt_lens, enc_lens, H)
        running_att[f"layer{i + 1}_dec_self"] = a_self
        running_att[f"layer{i + 1}_dec_cross"] = a_cross

    # final vocab projection, padded to a lane-dense multiple of 128
    v_pad = -(-V // 128) * 128
    final_w = params["final_w"]
    final_b = params["final_b"]
    if v_pad != V:
        final_w = jnp.pad(final_w, ((0, 0), (0, v_pad - V)))
        final_b = jnp.pad(final_b, ((0, v_pad - V),))
    seq_out = pallas_linear(x.reshape(B * T, D), final_w, final_b)
    seq_out = seq_out[:, :V].reshape(B, T, V)
    return seq_out, running_att


# --------------------------------------------------------------------------
# Deterministic parameter init
# --------------------------------------------------------------------------
def init_params(key, cfg):
    D, Dff, V = cfg["d_model"], cfg["d_ff"], cfg["target_vocab_size"]

    def dense(k, din, dout, scale=0.02):
        return jax.random.normal(k, (din, dout), jnp.float32) * scale

    keys = jax.random.split(key, 2 + cfg["num_layers"])
    params = {
        "embedding": jax.random.normal(keys[0], (V, D), jnp.float32) * 0.02,
        "pos_encoding": sinusoidal_positional_encoding(cfg["max_len"], D),
        "final_w": dense(keys[1], D, V),
        "final_b": jnp.zeros((V,), jnp.float32),
        "layers": [],
    }
    for li in range(cfg["num_layers"]):
        lk = jax.random.split(keys[2 + li], 10)

        def mha_params(k4):
            ks = jax.random.split(k4, 4)
            wk = dense(ks[1], D, D)
            wv = dense(ks[2], D, D)
            return {
                "wq": dense(ks[0], D, D), "bq": jnp.zeros((D,), jnp.float32),
                "wkv": jnp.concatenate([wk, wv], axis=1),     # fused K|V weight
                "bkv": jnp.zeros((2 * D,), jnp.float32),
                "wo": dense(ks[3], D, D), "bo": jnp.zeros((D,), jnp.float32),
            }

        params["layers"].append({
            "mha1": mha_params(lk[0]),
            "mha2": mha_params(lk[1]),
            "ffn_w1": dense(lk[2], D, Dff), "ffn_b1": jnp.zeros((Dff,), jnp.float32),
            "ffn_w2": dense(lk[3], Dff, D), "ffn_b2": jnp.zeros((D,), jnp.float32),
            "pre_norm_g": jnp.ones((D,), jnp.float32),
            "pre_norm_b": jnp.zeros((D,), jnp.float32),
            "ln1_g": jnp.ones((D,), jnp.float32), "ln1_b": jnp.zeros((D,), jnp.float32),
            "ln2_g": jnp.ones((D,), jnp.float32), "ln2_b": jnp.zeros((D,), jnp.float32),
            "ln3_g": jnp.ones((D,), jnp.float32), "ln3_b": jnp.zeros((D,), jnp.float32),
        })
    return params


# --------------------------------------------------------------------------
# Main
# --------------------------------------------------------------------------
if __name__ == "__main__":
    cfg = dict(
        num_layers=2,
        d_model=32,
        num_heads=4,
        d_ff=64,
        dropout=0.1,          # eval mode -> identity
        max_len=16,
        target_vocab_size=40,
    )

    key = jax.random.PRNGKey(0)
    k_params, k_tok, k_enc = jax.random.split(key, 3)

    B, T, S = 2, 8, 10
    params = init_params(k_params, cfg)

    padded_targets = jax.random.randint(
        k_tok, (B, T), 0, cfg["target_vocab_size"], dtype=jnp.int32
    )
    target_lengths = jnp.array([8, 5], dtype=jnp.int32)
    enc_output = jax.random.normal(k_enc, (B, S, cfg["d_model"]), jnp.float32)
    enc_input_lengths = jnp.array([10, 7], dtype=jnp.int32)

    seq_out, running_att = decoder_forward(
        params, cfg, padded_targets, target_lengths, enc_output, enc_input_lengths
    )
    seq_out = jax.block_until_ready(seq_out)
    for v in running_att.values():
        jax.block_until_ready(v)

    assert seq_out.shape == (B, T, cfg["target_vocab_size"])
    assert running_att["layer1_dec_self"].shape == (B, T, T)
    assert running_att["layer1_dec_cross"].shape == (B, T, S)
    assert bool(jnp.all(jnp.isfinite(seq_out)))
    # attention rows over valid (unmasked) keys must sum to ~1
    row_sums = jnp.sum(running_att["layer1_dec_self"], axis=-1)
    assert bool(jnp.all(jnp.abs(row_sums - 1.0) < 1e-2))

    print("KERNEL_OK")
</pallas_src>

<mosaic_0001>
module attributes {stable_mosaic.version = 11 : i64} {
  func.func @_attn_kernel(%arg0: i32, %arg1: i32, %arg2: memref<2xi32, #tpu.memory_space<smem>>, %arg3: memref<1x8x32xf32, #tpu.memory_space<vmem>>, %arg4: memref<1x8x32xf32, #tpu.memory_space<vmem>>, %arg5: memref<32x32xf32, #tpu.memory_space<vmem>>, %arg6: memref<1x32xf32, #tpu.memory_space<vmem>>, %arg7: memref<32x64xf32, #tpu.memory_space<vmem>>, %arg8: memref<1x64xf32, #tpu.memory_space<vmem>>, %arg9: memref<32x32xf32, #tpu.memory_space<vmem>>, %arg10: memref<1x32xf32, #tpu.memory_space<vmem>>, %arg11: memref<1x32xf32, #tpu.memory_space<vmem>>, %arg12: memref<1x32xf32, #tpu.memory_space<vmem>>, %arg13: memref<1x32xf32, #tpu.memory_space<vmem>>, %arg14: memref<1x32xf32, #tpu.memory_space<vmem>>, %arg15: memref<1x8x32xf32, #tpu.memory_space<vmem>>, %arg16: memref<1x8x8xf32, #tpu.memory_space<vmem>>) attributes {dimension_semantics = [#tpu.dimension_semantics<parallel>, #tpu.dimension_semantics<parallel>], iteration_bounds = array<i64: 2, 1>, scalar_prefetch = 1 : i64, scratch_operands = 0 : i64, tpu.core_type = #tpu.core_type<tc>, window_params = [{transform_indices = @transform_0, window_bounds = array<i64: 1, 8, 32>}, {transform_indices = @transform_1, window_bounds = array<i64: 1, 8, 32>}, {pipeline_mode = #tpu.pipeline_mode<synchronous>, transform_indices = @transform_2, window_bounds = array<i64: 32, 32>}, {pipeline_mode = #tpu.pipeline_mode<synchronous>, transform_indices = @transform_3, window_bounds = array<i64: 1, 32>}, {pipeline_mode = #tpu.pipeline_mode<synchronous>, transform_indices = @transform_4, window_bounds = array<i64: 32, 64>}, {pipeline_mode = #tpu.pipeline_mode<synchronous>, transform_indices = @transform_5, window_bounds = array<i64: 1, 64>}, {pipeline_mode = #tpu.pipeline_mode<synchronous>, transform_indices = @transform_6, window_bounds = array<i64: 32, 32>}, {pipeline_mode = #tpu.pipeline_mode<synchronous>, transform_indices = @transform_7, window_bounds = array<i64: 1, 32>}, {pipeline_mode = #tpu.pipeline_mode<synchronous>, transform_indices = @transform_8, window_bounds = array<i64: 1, 32>}, {pipeline_mode = #tpu.pipeline_mode<synchronous>, transform_indices = @transform_9, window_bounds = array<i64: 1, 32>}, {pipeline_mode = #tpu.pipeline_mode<synchronous>, transform_indices = @transform_10, window_bounds = array<i64: 1, 32>}, {pipeline_mode = #tpu.pipeline_mode<synchronous>, transform_indices = @transform_11, window_bounds = array<i64: 1, 32>}, {transform_indices = @transform_12, window_bounds = array<i64: 1, 8, 32>}, {transform_indices = @transform_13, window_bounds = array<i64: 1, 8, 8>}]} {
    %c8_i32 = arith.constant 8 : i32
    %0 = arith.muli %arg1, %c8_i32 : i32
    %c0 = arith.constant 0 : index
    %c0_0 = arith.constant 0 : index
    %c0_1 = arith.constant 0 : index
    %1 = vector.load %arg3[%c0, %c0_0, %c0_1] : memref<1x8x32xf32, #tpu.memory_space<vmem>>, vector<1x8x32xf32>
    %2 = vector.shape_cast %1 : vector<1x8x32xf32> to vector<8x32xf32>
    %c0_2 = arith.constant 0 : index
    %c0_3 = arith.constant 0 : index
    %3 = vector.load %arg11[%c0_2, %c0_3] : memref<1x32xf32, #tpu.memory_space<vmem>>, vector<1x32xf32>
    %c0_4 = arith.constant 0 : index
    %c0_5 = arith.constant 0 : index
    %4 = vector.load %arg12[%c0_4, %c0_5] : memref<1x32xf32, #tpu.memory_space<vmem>>, vector<1x32xf32>
    %cst = arith.constant dense<0.000000e+00> : vector<8xf32>
    %5 = vector.multi_reduction <add>, %2, %cst [1] : vector<8x32xf32> to vector<8xf32>
    %6 = vector.shape_cast %5 : vector<8xf32> to vector<8x1xf32>
    %cst_6 = arith.constant 3.200000e+01 : f32
    %7 = vector.broadcast %cst_6 : f32 to vector<8x1xf32>
    %8 = arith.divf %6, %7 : vector<8x1xf32>
    %9 = vector.broadcast %8 : vector<8x1xf32> to vector<8x32xf32>
    %10 = arith.subf %2, %9 : vector<8x32xf32>
    %11 = arith.mulf %10, %10 : vector<8x32xf32>
    %cst_7 = arith.constant dense<0.000000e+00> : vector<8xf32>
    %12 = vector.multi_reduction <add>, %11, %cst_7 [1] : vector<8x32xf32> to vector<8xf32>
    %13 = vector.shape_cast %12 : vector<8xf32> to vector<8x1xf32>
    %cst_8 = arith.constant 3.200000e+01 : f32
    %14 = vector.broadcast %cst_8 : f32 to vector<8x1xf32>
    %15 = arith.divf %13, %14 : vector<8x1xf32>
    %16 = vector.broadcast %8 : vector<8x1xf32> to vector<8x32xf32>
    %17 = arith.subf %2, %16 : vector<8x32xf32>
    %cst_9 = arith.constant 9.99999974E-6 : f32
    %18 = vector.broadcast %cst_9 : f32 to vector<8x1xf32>
    %19 = arith.addf %15, %18 : vector<8x1xf32>
    %20 = math.rsqrt %19 : vector<8x1xf32>
    %21 = vector.broadcast %20 : vector<8x1xf32> to vector<8x32xf32>
    %22 = arith.mulf %17, %21 : vector<8x32xf32>
    %23 = vector.broadcast %3 : vector<1x32xf32> to vector<8x32xf32>
    %24 = arith.mulf %22, %23 : vector<8x32xf32>
    %25 = vector.broadcast %4 : vector<1x32xf32> to vector<8x32xf32>
    %26 = arith.addf %24, %25 : vector<8x32xf32>
    %c0_10 = arith.constant 0 : index
    %c0_11 = arith.constant 0 : index
    %27 = vector.load %arg5[%c0_10, %c0_11] : memref<32x32xf32, #tpu.memory_space<vmem>>, vector<32x32xf32>
    %cst_12 = arith.constant dense<0.000000e+00> : vector<8x32xf32>
    %28 = tpu.matmul %26, %27, %cst_12 {dimension_numbers = #tpu.dot_dimension_numbers<[1], [0], [0], [1], [0, 0, 1, 1], [], []>} : vector<8x32xf32>, vector<32x32xf32>, vector<8x32xf32> -> vector<8x32xf32>
    %c0_13 = arith.constant 0 : index
    %c0_14 = arith.constant 0 : index
    %29 = vector.load %arg6[%c0_13, %c0_14] : memref<1x32xf32, #tpu.memory_space<vmem>>, vector<1x32xf32>
    %30 = vector.broadcast %29 : vector<1x32xf32> to vector<8x32xf32>
    %31 = arith.addf %28, %30 : vector<8x32xf32>
    %c0_15 = arith.constant 0 : index
    %c0_16 = arith.constant 0 : index
    %c0_17 = arith.constant 0 : index
    %32 = vector.load %arg4[%c0_15, %c0_16, %c0_17] : memref<1x8x32xf32, #tpu.memory_space<vmem>>, vector<1x8x32xf32>
    %33 = vector.shape_cast %32 : vector<1x8x32xf32> to vector<8x32xf32>
    %c0_18 = arith.constant 0 : index
    %c0_19 = arith.constant 0 : index
    %34 = vector.load %arg11[%c0_18, %c0_19] : memref<1x32xf32, #tpu.memory_space<vmem>>, vector<1x32xf32>
    %c0_20 = arith.constant 0 : index
    %c0_21 = arith.constant 0 : index
    %35 = vector.load %arg12[%c0_20, %c0_21] : memref<1x32xf32, #tpu.memory_space<vmem>>, vector<1x32xf32>
    %cst_22 = arith.constant dense<0.000000e+00> : vector<8xf32>
    %36 = vector.multi_reduction <add>, %33, %cst_22 [1] : vector<8x32xf32> to vector<8xf32>
    %37 = vector.shape_cast %36 : vector<8xf32> to vector<8x1xf32>
    %cst_23 = arith.constant 3.200000e+01 : f32
    %38 = vector.broadcast %cst_23 : f32 to vector<8x1xf32>
    %39 = arith.divf %37, %38 : vector<8x1xf32>
    %40 = vector.broadcast %39 : vector<8x1xf32> to vector<8x32xf32>
    %41 = arith.subf %33, %40 : vector<8x32xf32>
    %42 = arith.mulf %41, %41 : vector<8x32xf32>
    %cst_24 = arith.constant dense<0.000000e+00> : vector<8xf32>
    %43 = vector.multi_reduction <add>, %42, %cst_24 [1] : vector<8x32xf32> to vector<8xf32>
    %44 = vector.shape_cast %43 : vector<8xf32> to vector<8x1xf32>
    %cst_25 = arith.constant 3.200000e+01 : f32
    %45 = vector.broadcast %cst_25 : f32 to vector<8x1xf32>
    %46 = arith.divf %44, %45 : vector<8x1xf32>
    %47 = vector.broadcast %39 : vector<8x1xf32> to vector<8x32xf32>
    %48 = arith.subf %33, %47 : vector<8x32xf32>
    %cst_26 = arith.constant 9.99999974E-6 : f32
    %49 = vector.broadcast %cst_26 : f32 to vector<8x1xf32>
    %50 = arith.addf %46, %49 : vector<8x1xf32>
    %51 = math.rsqrt %50 : vector<8x1xf32>
    %52 = vector.broadcast %51 : vector<8x1xf32> to vector<8x32xf32>
    %53 = arith.mulf %48, %52 : vector<8x32xf32>
    %54 = vector.broadcast %34 : vector<1x32xf32> to vector<8x32xf32>
    %55 = arith.mulf %53, %54 : vector<8x32xf32>
    %56 = vector.broadcast %35 : vector<1x32xf32> to vector<8x32xf32>
    %57 = arith.addf %55, %56 : vector<8x32xf32>
    %c0_27 = arith.constant 0 : index
    %c0_28 = arith.constant 0 : index
    %58 = vector.load %arg7[%c0_27, %c0_28] : memref<32x64xf32, #tpu.memory_space<vmem>>, vector<32x64xf32>
    %cst_29 = arith.constant dense<0.000000e+00> : vector<8x64xf32>
    %59 = tpu.matmul %57, %58, %cst_29 {dimension_numbers = #tpu.dot_dimension_numbers<[1], [0], [0], [1], [0, 0, 1, 1], [], []>} : vector<8x32xf32>, vector<32x64xf32>, vector<8x64xf32> -> vector<8x64xf32>
    %c0_30 = arith.constant 0 : index
    %c0_31 = arith.constant 0 : index
    %60 = vector.load %arg8[%c0_30, %c0_31] : memref<1x64xf32, #tpu.memory_space<vmem>>, vector<1x64xf32>
    %61 = vector.broadcast %60 : vector<1x64xf32> to vector<8x64xf32>
    %62 = arith.addf %59, %61 : vector<8x64xf32>
    %63 = vector.extract_strided_slice %62 {offsets = [0, 0], sizes = [8, 32], strides = [1, 1]} : vector<8x64xf32> to vector<8x32xf32>
    %64 = vector.extract_strided_slice %62 {offsets = [0, 32], sizes = [8, 32], strides = [1, 1]} : vector<8x64xf32> to vector<8x32xf32>
    %65 = arith.index_cast %arg0 : i32 to index
    %66 = memref.load %arg2[%65] : memref<2xi32, #tpu.memory_space<smem>>
    %67 = tpu.iota {dimensions = array<i32: 0>} : vector<8x8xi32>
    %68 = vector.broadcast %0 : i32 to vector<8x8xi32>
    %69 = arith.addi %67, %68 : vector<8x8xi32>
    %70 = tpu.iota {dimensions = array<i32: 1>} : vector<8x8xi32>
    %71 = vector.broadcast %66 : i32 to vector<8x8xi32>
    %72 = arith.cmpi sge, %70, %71 : vector<8x8xi32>
    %73 = arith.cmpi sgt, %70, %69 : vector<8x8xi32>
    %74 = arith.ori %72, %73 : vector<8x8xi1>
    %cst_32 = arith.constant -1.000000e+30 : f32
    %cst_33 = arith.constant 0.000000e+00 : f32
    %75 = vector.broadcast %cst_32 : f32 to vector<8x8xf32>
    %76 = vector.broadcast %cst_33 : f32 to vector<8x8xf32>
    %77 = arith.select %74, %75, %76 : vector<8x8xi1>, vector<8x8xf32>
    %cst_34 = arith.constant 0.000000e+00 : f32
    %78 = vector.broadcast %cst_34 : f32 to vector<8x8xf32>
    %79 = vector.extract_strided_slice %31 {offsets = [0, 0], sizes = [8, 8], strides = [1, 1]} : vector<8x32xf32> to vector<8x8xf32>
    %80 = vector.extract_strided_slice %63 {offsets = [0, 0], sizes = [8, 8], strides = [1, 1]} : vector<8x32xf32> to vector<8x8xf32>
    %81 = vector.extract_strided_slice %64 {offsets = [0, 0], sizes = [8, 8], strides = [1, 1]} : vector<8x32xf32> to vector<8x8xf32>
    %cst_35 = arith.constant dense<0.000000e+00> : vector<8x8xf32>
    %82 = tpu.matmul %79, %80, %cst_35 {dimension_numbers = #tpu.dot_dimension_numbers<[1], [1], [0], [0], [0, 0, 1, 0], [], []>} : vector<8x8xf32>, vector<8x8xf32>, vector<8x8xf32> -> vector<8x8xf32>
    %83 = arith.addf %82, %77 : vector<8x8xf32>
    %cst_36 = arith.constant dense<0xFF800000> : vector<8xf32>
    %84 = vector.multi_reduction <maximumf>, %83, %cst_36 [1] : vector<8x8xf32> to vector<8xf32>
    %85 = vector.shape_cast %84 : vector<8xf32> to vector<8x1xf32>
    %86 = vector.broadcast %85 : vector<8x1xf32> to vector<8x8xf32>
    %87 = arith.subf %83, %86 : vector<8x8xf32>
    %88 = math.exp %87 : vector<8x8xf32>
    %cst_37 = arith.constant dense<0.000000e+00> : vector<8xf32>
    %89 = vector.multi_reduction <add>, %88, %cst_37 [1] : vector<8x8xf32> to vector<8xf32>
    %90 = vector.shape_cast %89 : vector<8xf32> to vector<8x1xf32>
    %91 = tpu.reciprocal %90 {approx = true} : vector<8x1xf32> -> vector<8x1xf32>
    %92 = vector.broadcast %91 : vector<8x1xf32> to vector<8x8xf32>
    %93 = arith.mulf %88, %92 : vector<8x8xf32>
    %94 = arith.addf %78, %93 : vector<8x8xf32>
    %cst_38 = arith.constant dense<0.000000e+00> : vector<8x8xf32>
    %95 = tpu.matmul %93, %81, %cst_38 {dimension_numbers = #tpu.dot_dimension_numbers<[1], [0], [0], [1], [0, 0, 1, 1], [], []>} : vector<8x8xf32>, vector<8x8xf32>, vector<8x8xf32> -> vector<8x8xf32>
    %96 = vector.extract_strided_slice %31 {offsets = [0, 8], sizes = [8, 8], strides = [1, 1]} : vector<8x32xf32> to vector<8x8xf32>
    %97 = vector.extract_strided_slice %63 {offsets = [0, 8], sizes = [8, 8], strides = [1, 1]} : vector<8x32xf32> to vector<8x8xf32>
    %98 = vector.extract_strided_slice %64 {offsets = [0, 8], sizes = [8, 8], strides = [1, 1]} : vector<8x32xf32> to vector<8x8xf32>
    %cst_39 = arith.constant dense<0.000000e+00> : vector<8x8xf32>
    %99 = tpu.matmul %96, %97, %cst_39 {dimension_numbers = #tpu.dot_dimension_numbers<[1], [1], [0], [0], [0, 0, 1, 0], [], []>} : vector<8x8xf32>, vector<8x8xf32>, vector<8x8xf32> -> vector<8x8xf32>
    %100 = arith.addf %99, %77 : vector<8x8xf32>
    %cst_40 = arith.constant dense<0xFF800000> : vector<8xf32>
    %101 = vector.multi_reduction <maximumf>, %100, %cst_40 [1] : vector<8x8xf32> to vector<8xf32>
    %102 = vector.shape_cast %101 : vector<8xf32> to vector<8x1xf32>
    %103 = vector.broadcast %102 : vector<8x1xf32> to vector<8x8xf32>
    %104 = arith.subf %100, %103 : vector<8x8xf32>
    %105 = math.exp %104 : vector<8x8xf32>
    %cst_41 = arith.constant dense<0.000000e+00> : vector<8xf32>
    %106 = vector.multi_reduction <add>, %105, %cst_41 [1] : vector<8x8xf32> to vector<8xf32>
    %107 = vector.shape_cast %106 : vector<8xf32> to vector<8x1xf32>
    %108 = tpu.reciprocal %107 {approx = true} : vector<8x1xf32> -> vector<8x1xf32>
    %109 = vector.broadcast %108 : vector<8x1xf32> to vector<8x8xf32>
    %110 = arith.mulf %105, %109 : vector<8x8xf32>
    %111 = arith.addf %94, %110 : vector<8x8xf32>
    %cst_42 = arith.constant dense<0.000000e+00> : vector<8x8xf32>
    %112 = tpu.matmul %110, %98, %cst_42 {dimension_numbers = #tpu.dot_dimension_numbers<[1], [0], [0], [1], [0, 0, 1, 1], [], []>} : vector<8x8xf32>, vector<8x8xf32>, vector<8x8xf32> -> vector<8x8xf32>
    %113 = vector.extract_strided_slice %31 {offsets = [0, 16], sizes = [8, 8], strides = [1, 1]} : vector<8x32xf32> to vector<8x8xf32>
    %114 = vector.extract_strided_slice %63 {offsets = [0, 16], sizes = [8, 8], strides = [1, 1]} : vector<8x32xf32> to vector<8x8xf32>
    %115 = vector.extract_strided_slice %64 {offsets = [0, 16], sizes = [8, 8], strides = [1, 1]} : vector<8x32xf32> to vector<8x8xf32>
    %cst_43 = arith.constant dense<0.000000e+00> : vector<8x8xf32>
    %116 = tpu.matmul %113, %114, %cst_43 {dimension_numbers = #tpu.dot_dimension_numbers<[1], [1], [0], [0], [0, 0, 1, 0], [], []>} : vector<8x8xf32>, vector<8x8xf32>, vector<8x8xf32> -> vector<8x8xf32>
    %117 = arith.addf %116, %77 : vector<8x8xf32>
    %cst_44 = arith.constant dense<0xFF800000> : vector<8xf32>
    %118 = vector.multi_reduction <maximumf>, %117, %cst_44 [1] : vector<8x8xf32> to vector<8xf32>
    %119 = vector.shape_cast %118 : vector<8xf32> to vector<8x1xf32>
    %120 = vector.broadcast %119 : vector<8x1xf32> to vector<8x8xf32>
    %121 = arith.subf %117, %120 : vector<8x8xf32>
    %122 = math.exp %121 : vector<8x8xf32>
    %cst_45 = arith.constant dense<0.000000e+00> : vector<8xf32>
    %123 = vector.multi_reduction <add>, %122, %cst_45 [1] : vector<8x8xf32> to vector<8xf32>
    %124 = vector.shape_cast %123 : vector<8xf32> to vector<8x1xf32>
    %125 = tpu.reciprocal %124 {approx = true} : vector<8x1xf32> -> vector<8x1xf32>
    %126 = vector.broadcast %125 : vector<8x1xf32> to vector<8x8xf32>
    %127 = arith.mulf %122, %126 : vector<8x8xf32>
    %128 = arith.addf %111, %127 : vector<8x8xf32>
    %cst_46 = arith.constant dense<0.000000e+00> : vector<8x8xf32>
    %129 = tpu.matmul %127, %115, %cst_46 {dimension_numbers = #tpu.dot_dimension_numbers<[1], [0], [0], [1], [0, 0, 1, 1], [], []>} : vector<8x8xf32>, vector<8x8xf32>, vector<8x8xf32> -> vector<8x8xf32>
    %130 = vector.extract_strided_slice %31 {offsets = [0, 24], sizes = [8, 8], strides = [1, 1]} : vector<8x32xf32> to vector<8x8xf32>
    %131 = vector.extract_strided_slice %63 {offsets = [0, 24], sizes = [8, 8], strides = [1, 1]} : vector<8x32xf32> to vector<8x8xf32>
    %132 = vector.extract_strided_slice %64 {offsets = [0, 24], sizes = [8, 8], strides = [1, 1]} : vector<8x32xf32> to vector<8x8xf32>
    %cst_47 = arith.constant dense<0.000000e+00> : vector<8x8xf32>
    %133 = tpu.matmul %130, %131, %cst_47 {dimension_numbers = #tpu.dot_dimension_numbers<[1], [1], [0], [0], [0, 0, 1, 0], [], []>} : vector<8x8xf32>, vector<8x8xf32>, vector<8x8xf32> -> vector<8x8xf32>
    %134 = arith.addf %133, %77 : vector<8x8xf32>
    %cst_48 = arith.constant dense<0xFF800000> : vector<8xf32>
    %135 = vector.multi_reduction <maximumf>, %134, %cst_48 [1] : vector<8x8xf32> to vector<8xf32>
    %136 = vector.shape_cast %135 : vector<8xf32> to vector<8x1xf32>
    %137 = vector.broadcast %136 : vector<8x1xf32> to vector<8x8xf32>
    %138 = arith.subf %134, %137 : vector<8x8xf32>
    %139 = math.exp %138 : vector<8x8xf32>
    %cst_49 = arith.constant dense<0.000000e+00> : vector<8xf32>
    %140 = vector.multi_reduction <add>, %139, %cst_49 [1] : vector<8x8xf32> to vector<8xf32>
    %141 = vector.shape_cast %140 : vector<8xf32> to vector<8x1xf32>
    %142 = tpu.reciprocal %141 {approx = true} : vector<8x1xf32> -> vector<8x1xf32>
    %143 = vector.broadcast %142 : vector<8x1xf32> to vector<8x8xf32>
    %144 = arith.mulf %139, %143 : vector<8x8xf32>
    %145 = arith.addf %128, %144 : vector<8x8xf32>
    %cst_50 = arith.constant dense<0.000000e+00> : vector<8x8xf32>
    %146 = tpu.matmul %144, %132, %cst_50 {dimension_numbers = #tpu.dot_dimension_numbers<[1], [0], [0], [1], [0, 0, 1, 1], [], []>} : vector<8x8xf32>, vector<8x8xf32>, vector<8x8xf32> -> vector<8x8xf32>
    %147 = tpu.concatenate %95, %112, %129, %146 in 1 : vector<8x8xf32>, vector<8x8xf32>, vector<8x8xf32>, vector<8x8xf32> -> vector<8x32xf32>
    %c0_51 = arith.constant 0 : index
    %c0_52 = arith.constant 0 : index
    %148 = vector.load %arg9[%c0_51, %c0_52] : memref<32x32xf32, #tpu.memory_space<vmem>>, vector<32x32xf32>
    %cst_53 = arith.constant dense<0.000000e+00> : vector<8x32xf32>
    %149 = tpu.matmul %147, %148, %cst_53 {dimension_numbers = #tpu.dot_dimension_numbers<[1], [0], [0], [1], [0, 0, 1, 1], [], []>} : vector<8x32xf32>, vector<32x32xf32>, vector<8x32xf32> -> vector<8x32xf32>
    %c0_54 = arith.constant 0 : index
    %c0_55 = arith.constant 0 : index
    %150 = vector.load %arg10[%c0_54, %c0_55] : memref<1x32xf32, #tpu.memory_space<vmem>>, vector<1x32xf32>
    %151 = vector.broadcast %150 : vector<1x32xf32> to vector<8x32xf32>
    %152 = arith.addf %149, %151 : vector<8x32xf32>
    %153 = arith.addf %26, %152 : vector<8x32xf32>
    %c0_56 = arith.constant 0 : index
    %c0_57 = arith.constant 0 : index
    %154 = vector.load %arg13[%c0_56, %c0_57] : memref<1x32xf32, #tpu.memory_space<vmem>>, vector<1x32xf32>
    %c0_58 = arith.constant 0 : index
    %c0_59 = arith.constant 0 : index
    %155 = vector.load %arg14[%c0_58, %c0_59] : memref<1x32xf32, #tpu.memory_space<vmem>>, vector<1x32xf32>
    %cst_60 = arith.constant dense<0.000000e+00> : vector<8xf32>
    %156 = vector.multi_reduction <add>, %153, %cst_60 [1] : vector<8x32xf32> to vector<8xf32>
    %157 = vector.shape_cast %156 : vector<8xf32> to vector<8x1xf32>
    %cst_61 = arith.constant 3.200000e+01 : f32
    %158 = vector.broadcast %cst_61 : f32 to vector<8x1xf32>
    %159 = arith.divf %157, %158 : vector<8x1xf32>
    %160 = vector.broadcast %159 : vector<8x1xf32> to vector<8x32xf32>
    %161 = arith.subf %153, %160 : vector<8x32xf32>
    %162 = arith.mulf %161, %161 : vector<8x32xf32>
    %cst_62 = arith.constant dense<0.000000e+00> : vector<8xf32>
    %163 = vector.multi_reduction <add>, %162, %cst_62 [1] : vector<8x32xf32> to vector<8xf32>
    %164 = vector.shape_cast %163 : vector<8xf32> to vector<8x1xf32>
    %cst_63 = arith.constant 3.200000e+01 : f32
    %165 = vector.broadcast %cst_63 : f32 to vector<8x1xf32>
    %166 = arith.divf %164, %165 : vector<8x1xf32>
    %167 = vector.broadcast %159 : vector<8x1xf32> to vector<8x32xf32>
    %168 = arith.subf %153, %167 : vector<8x32xf32>
    %cst_64 = arith.constant 9.99999974E-6 : f32
    %169 = vector.broadcast %cst_64 : f32 to vector<8x1xf32>
    %170 = arith.addf %166, %169 : vector<8x1xf32>
    %171 = math.rsqrt %170 : vector<8x1xf32>
    %172 = vector.broadcast %171 : vector<8x1xf32> to vector<8x32xf32>
    %173 = arith.mulf %168, %172 : vector<8x32xf32>
    %174 = vector.broadcast %154 : vector<1x32xf32> to vector<8x32xf32>
    %175 = arith.mulf %173, %174 : vector<8x32xf32>
    %176 = vector.broadcast %155 : vector<1x32xf32> to vector<8x32xf32>
    %177 = arith.addf %175, %176 : vector<8x32xf32>
    %c0_65 = arith.constant 0 : index
    %c0_66 = arith.constant 0 : index
    %c0_67 = arith.constant 0 : index
    %178 = vector.load %arg15[%c0_65, %c0_66, %c0_67] : memref<1x8x32xf32, #tpu.memory_space<vmem>>, vector<1x8x32xf32>
    %179 = vector.shape_cast %178 : vector<1x8x32xf32> to vector<8x32xf32>
    %180 = vector.shape_cast %177 : vector<8x32xf32> to vector<1x8x32xf32>
    tpu.vector_store %arg15[%c0_65, %c0_66, %c0_67], %180 {strides = array<i32>} : memref<1x8x32xf32, #tpu.memory_space<vmem>>, vector<1x8x32xf32>,
    %cst_68 = arith.constant 2.500000e-01 : f32
    %181 = vector.broadcast %cst_68 : f32 to vector<8x8xf32>
    %182 = arith.mulf %145, %181 : vector<8x8xf32>
    %c0_69 = arith.constant 0 : index
    %c0_70 = arith.constant 0 : index
    %c0_71 = arith.constant 0 : index
    %183 = vector.load %arg16[%c0_69, %c0_70, %c0_71] : memref<1x8x8xf32, #tpu.memory_space<vmem>>, vector<1x8x8xf32>
    %184 = vector.shape_cast %183 : vector<1x8x8xf32> to vector<8x8xf32>
    %185 = vector.shape_cast %182 : vector<8x8xf32> to vector<1x8x8xf32>
    tpu.vector_store %arg16[%c0_69, %c0_70, %c0_71], %185 {strides = array<i32>} : memref<1x8x8xf32, #tpu.memory_space<vmem>>, vector<1x8x8xf32>,
    return
  }
  func.func @transform_0(%arg0: i32, %arg1: i32, %arg2: memref<2xi32, #tpu.memory_space<smem>>) -> (i32, i32, i32) {
    %c0_i32 = arith.constant 0 : i32
    %c0_i32_0 = arith.constant 0 : i32
    return %arg0, %arg1, %c0_i32 : i32, i32, i32
  }
  func.func @transform_1(%arg0: i32, %arg1: i32, %arg2: memref<2xi32, #tpu.memory_space<smem>>) -> (i32, i32, i32) {
    %c0_i32 = arith.constant 0 : i32
    %c0_i32_0 = arith.constant 0 : i32
    %c0_i32_1 = arith.constant 0 : i32
    return %arg0, %c0_i32, %c0_i32_0 : i32, i32, i32
  }
  func.func @transform_2(%arg0: i32, %arg1: i32, %arg2: memref<2xi32, #tpu.memory_space<smem>>) -> (i32, i32) {
    %c0_i32 = arith.constant 0 : i32
    %c0_i32_0 = arith.constant 0 : i32
    %c0_i32_1 = arith.constant 0 : i32
    return %c0_i32, %c0_i32_0 : i32, i32
  }
  func.func @transform_3(%arg0: i32, %arg1: i32, %arg2: memref<2xi32, #tpu.memory_space<smem>>) -> (i32, i32) {
    %c0_i32 = arith.constant 0 : i32
    %c0_i32_0 = arith.constant 0 : i32
    %c0_i32_1 = arith.constant 0 : i32
    return %c0_i32, %c0_i32_0 : i32, i32
  }
  func.func @transform_4(%arg0: i32, %arg1: i32, %arg2: memref<2xi32, #tpu.memory_space<smem>>) -> (i32, i32) {
    %c0_i32 = arith.constant 0 : i32
    %c0_i32_0 = arith.constant 0 : i32
    %c0_i32_1 = arith.constant 0 : i32
    return %c0_i32, %c0_i32_0 : i32, i32
  }
  func.func @transform_5(%arg0: i32, %arg1: i32, %arg2: memref<2xi32, #tpu.memory_space<smem>>) -> (i32, i32) {
    %c0_i32 = arith.constant 0 : i32
    %c0_i32_0 = arith.constant 0 : i32
    %c0_i32_1 = arith.constant 0 : i32
    return %c0_i32, %c0_i32_0 : i32, i32
  }
  func.func @transform_6(%arg0: i32, %arg1: i32, %arg2: memref<2xi32, #tpu.memory_space<smem>>) -> (i32, i32) {
    %c0_i32 = arith.constant 0 : i32
    %c0_i32_0 = arith.constant 0 : i32
    %c0_i32_1 = arith.constant 0 : i32
    return %c0_i32, %c0_i32_0 : i32, i32
  }
  func.func @transform_7(%arg0: i32, %arg1: i32, %arg2: memref<2xi32, #tpu.memory_space<smem>>) -> (i32, i32) {
    %c0_i32 = arith.constant 0 : i32
    %c0_i32_0 = arith.constant 0 : i32
    %c0_i32_1 = arith.constant 0 : i32
    return %c0_i32, %c0_i32_0 : i32, i32
  }
  func.func @transform_8(%arg0: i32, %arg1: i32, %arg2: memref<2xi32, #tpu.memory_space<smem>>) -> (i32, i32) {
    %c0_i32 = arith.constant 0 : i32
    %c0_i32_0 = arith.constant 0 : i32
    %c0_i32_1 = arith.constant 0 : i32
    return %c0_i32, %c0_i32_0 : i32, i32
  }
  func.func @transform_9(%arg0: i32, %arg1: i32, %arg2: memref<2xi32, #tpu.memory_space<smem>>) -> (i32, i32) {
    %c0_i32 = arith.constant 0 : i32
    %c0_i32_0 = arith.constant 0 : i32
    %c0_i32_1 = arith.constant 0 : i32
    return %c0_i32, %c0_i32_0 : i32, i32
  }
  func.func @transform_10(%arg0: i32, %arg1: i32, %arg2: memref<2xi32, #tpu.memory_space<smem>>) -> (i32, i32) {
    %c0_i32 = arith.constant 0 : i32
    %c0_i32_0 = arith.constant 0 : i32
    %c0_i32_1 = arith.constant 0 : i32
    return %c0_i32, %c0_i32_0 : i32, i32
  }
  func.func @transform_11(%arg0: i32, %arg1: i32, %arg2: memref<2xi32, #tpu.memory_space<smem>>) -> (i32, i32) {
    %c0_i32 = arith.constant 0 : i32
    %c0_i32_0 = arith.constant 0 : i32
    %c0_i32_1 = arith.constant 0 : i32
    return %c0_i32, %c0_i32_0 : i32, i32
  }
  func.func @transform_12(%arg0: i32, %arg1: i32, %arg2: memref<2xi32, #tpu.memory_space<smem>>) -> (i32, i32, i32) {
    %c0_i32 = arith.constant 0 : i32
    %c0_i32_0 = arith.constant 0 : i32
    return %arg0, %arg1, %c0_i32 : i32, i32, i32
  }
  func.func @transform_13(%arg0: i32, %arg1: i32, %arg2: memref<2xi32, #tpu.memory_space<smem>>) -> (i32, i32, i32) {
    %c0_i32 = arith.constant 0 : i32
    %c0_i32_0 = arith.constant 0 : i32
    return %arg0, %arg1, %c0_i32 : i32, i32, i32
  }
}

</mosaic_0001>

<llo_original>
// kernel: tpu_custom_call.1
$region0: #{tpu_custom_call.1}
  #allocation0 [shape = 'u32[]', space=smem, size = 0x4, offset = 0x4, fixed_abs, tag = 'smem constant byte address 0x4 - core index']
  #allocation1 [shape = 'u32[72,128]{1,0:T(1,128)}', space=vmem, size = 0x9000, scoped, tag = 'internal scratch']
  #allocation2 [shape = 's32[1]{0}', space=sflag, size = 0x4, scoped, tag = 'scoped memory for tpu_custom_call.1']
  #allocation3 [shape = 'u8[512]{0}', space=smem, size = 0x200, scoped, tag = 'prefetched SMEM operand 0']
  %s0 = inlined_call_operand.hbm [shape: s32[2], index: 0, kind: input, shape index: {}]
  %s1 = inlined_call_operand.hbm [shape: f32[2,8,32], index: 1, kind: input, shape index: {}]
  %s2 = inlined_call_operand.hbm [shape: f32[2,8,32], index: 2, kind: input, shape index: {}]
  %s3 = inlined_call_operand.hbm [shape: f32[32,32], index: 3, kind: input, shape index: {}]
  %s4 = inlined_call_operand.vmem [shape: f32[1,32], index: 4, kind: input, shape index: {}]
  %s5 = inlined_call_operand.hbm [shape: f32[32,64], index: 5, kind: input, shape index: {}]
  %s6 = inlined_call_operand.vmem [shape: f32[1,64], index: 6, kind: input, shape index: {}]
  %s7 = inlined_call_operand.hbm [shape: f32[32,32], index: 7, kind: input, shape index: {}]
  %s8 = inlined_call_operand.vmem [shape: f32[1,32], index: 8, kind: input, shape index: {}]
  %s9 = inlined_call_operand.vmem [shape: f32[1,32], index: 9, kind: input, shape index: {}]
  %s10 = inlined_call_operand.vmem [shape: f32[1,32], index: 10, kind: input, shape index: {}]
  %s11 = inlined_call_operand.vmem [shape: f32[1,32], index: 11, kind: input, shape index: {}]
  %s12 = inlined_call_operand.vmem [shape: f32[1,32], index: 12, kind: input, shape index: {}]
  %s13 = inlined_call_operand.hbm [shape: f32[2,8,32], index: 13, kind: output, shape index: {0}]
  %s14 = inlined_call_operand.hbm [shape: f32[2,8,8], index: 14, kind: output, shape index: {1}]
  %15 = xla_tuple %s13, %s14
  %s16 = sld [smem:[#allocation0]]
  $region109: #{tpu_custom_call.1} parent=0
    _
  %s18 = ssub.s32 1, %s16
  %s19 = scalar_select 0, %s18, %s16
  %s21 = sshll.u32 %s0, 4
  %s22 = int_to_ptr.hbm [resolvable:$true] %s21
  %24 = dma.hbm_to_smem %s22, 16, [#allocation3], [#allocation2]
  %26 = dma.done [#allocation2], 16
  %27 = sfence
  $region1: #{tpu_custom_call.1} parent=0
    #allocation4 [shape = 'u8[8192]{0}', space=vmem, size = 0x2000, scoped, tag = 'input window, operand 1']
    #allocation5 [shape = 's32[2]{0}', space=sflag, size = 0x8, scoped, tag = 'scoped memory for tpu_custom_call.1']
    #allocation6 [shape = 's32[2]{0}', space=sflag, size = 0x8, scoped, tag = 'scoped memory for tpu_custom_call.1']
    #allocation7 [shape = 'u8[8192]{0}', space=vmem, size = 0x2000, scoped, tag = 'input window, operand 2']
    #allocation8 [shape = 's32[2]{0}', space=sflag, size = 0x8, scoped, tag = 'scoped memory for tpu_custom_call.1']
    #allocation9 [shape = 'u8[16384]{0}', space=vmem, size = 0x4000, scoped, tag = 'input window, operand 3, single buffered']
    #allocation10 [shape = 'u8[16384]{0}', space=vmem, size = 0x4000, scoped, tag = 'input window, operand 5, single buffered']
    #allocation11 [shape = 's32[1]{0}', space=sflag, size = 0x4, scoped, tag = 'scoped memory for tpu_custom_call.1']
    #allocation12 [shape = 'u8[16384]{0}', space=vmem, size = 0x4000, scoped, tag = 'input window, operand 7, single buffered']
    #allocation13 [shape = 'u8[8192]{0}', space=vmem, size = 0x2000, scoped, tag = 'output window, operand 0']
    #allocation14 [shape = 'u8[8192]{0}', space=vmem, size = 0x2000, scoped, tag = 'output window, operand 1']
    #allocation15 [shape = 's32[2]{0}', space=sflag, size = 0x8, scoped, tag = 'scoped memory for tpu_custom_call.1']
    %28 = vsyncpa [#allocation5], 0
    %s29 = scalar_lea.sflag [#allocation5], 1
    %30 = vsyncpa %s29, 0
    %31 = vsyncpa [#allocation8], 0
    %s32 = scalar_lea.sflag [#allocation8], 1
    %33 = vsyncpa %s32, 0
    %34 = vsyncpa [#allocation11], 0
    %35 = vsyncpa [#allocation6], 0
    %s36 = scalar_lea.sflag [#allocation6], 1
    %37 = vsyncpa %s36, 0
    %38 = vsyncpa [#allocation15], 0
    %s39 = scalar_lea.sflag [#allocation15], 1
    %40 = vsyncpa %s39, 0
    loop: start=0, step=1, limit=4
    $region2: #{tpu_custom_call.1} parent=1 // loop_pre_header
      _
    $region3: #{tpu_custom_call.1} parent=1 // loop_header
      %s42 = sphi 0, %s46
      %p43 = scmp.ge.s32.totalorder %s42, 4
      %s49 = sphi 0, %s61
      %s50 = sphi 0, %s57
      %s51 = sphi 0, %s49
      %s52 = sphi 0, %s50
      %s53 = sphi 0, %s51
      %s54 = sphi 0, %s52
      %s66 = sphi 0, %s68
      %s69 = sphi 0, %s66
      %s70 = sphi 0, %s69
      %s86 = sphi 0, %s70
      %s92 = sphi 0, %s94
      %s95 = sphi 0, %s92
      %s96 = sphi 0, %s95
      %s112 = sphi 0, %s96
      %s116 = sphi 0, %s116
      %s118 = sphi 0, %s116
      %s119 = sphi 0, %s118
      %s133 = sphi 0, %s119
      %s137 = sphi 0, %s137
      %s139 = sphi 0, %s137
      %s140 = sphi 0, %s139
      %s154 = sphi 0, %s140
      %s158 = sphi 0, %s158
      %s160 = sphi 0, %s158
      %s161 = sphi 0, %s160
      %s175 = sphi 0, %s161
      %s179 = sphi 0, %s179
      %s181 = sphi 0, %s179
      %s182 = sphi 0, %s181
      %s196 = sphi 0, %s182
      %s200 = sphi 0, %s200
      %s202 = sphi 0, %s200
      %s203 = sphi 0, %s202
      %s217 = sphi 0, %s203
      %s221 = sphi 0, %s221
      %s223 = sphi 0, %s221
      %s224 = sphi 0, %s223
      %s238 = sphi 0, %s224
      %s242 = sphi 0, %s242
      %s244 = sphi 0, %s242
      %s245 = sphi 0, %s244
      %s259 = sphi 0, %s245
      %s263 = sphi 0, %s263
      %s265 = sphi 0, %s263
      %s266 = sphi 0, %s265
      %s280 = sphi 0, %s266
      %s284 = sphi 0, %s284
      %s286 = sphi 0, %s284
      %s287 = sphi 0, %s286
      %s301 = sphi 0, %s287
      %s305 = sphi 0, %s305
      %s307 = sphi 0, %s305
      %s308 = sphi 0, %s307
      %s322 = sphi 0, %s308
      %s330 = sphi 0, %s332
      %s333 = sphi 0, %s330
      %s334 = sphi 0, %s333
      %s350 = sphi 0, %s334
      %s358 = sphi 0, %s360
      %s361 = sphi 0, %s358
      %s362 = sphi 0, %s361
      %s378 = sphi 0, %s362
    $region4: #{tpu_custom_call.1} parent=1 // loop_header_branch
      %45 = sbr.rel (%p43) target = $region8
    $region5: #{tpu_custom_call.1} parent=1 // loop_body
      %s47 = ssub.s32 %s42, 1
      %s48 = ssub.s32 %s42, 2
      %s55 = sadd.s32 1, %s50
      %p56 = scmp.ge.s32.totalorder %s55, 1
      %s57 = scalar_select %p56, 0, %s55
      %s58 = sadd.s32 1, %s49
      %s59 = scalar_select %p56, %s58, %s49
      %p60 = scmp.ge.s32.totalorder %s59, 2
      %s61 = scalar_select %p60, 0, %s59
      %s62 = ssub.s32 %s49, %s61
      %s63 = ssub.s32 %s50, %s57
      %s64 = sor.u32 %s62, %s63
      %p65 = scmp.eq.s32.totalorder %s64, 0
      %s67 = sadd.s32 %s66, 1
      %s68 = scalar_select %p65, %s66, %s67
      %p71 = pneg %p65
      %p72 = scmp.eq.s32.totalorder %s42, 1
      %p73 = por %p71, %p72
      %p74 = scmp.ne.s32.totalorder %s66, %s69
      %p75 = scmp.eq.s32.totalorder %s42, 0
      %p76 = por %p74, %p75
      %p77 = scmp.ne.s32.totalorder %s66, %s69
      %p78 = scmp.eq.s32.totalorder %s47, 1
      %p79 = por %p77, %p78
      %p80 = scmp.ne.s32.totalorder %s69, %s70
      %p81 = scmp.eq.s32.totalorder %s47, 0
      %p82 = por %p80, %p81
      %p83 = scmp.ne.s32.totalorder %s69, %s70
      %p84 = scmp.eq.s32.totalorder %s48, 1
      %p85 = por %p83, %p84
      %p87 = scmp.ne.s32.totalorder %s70, %s86
      %p88 = scmp.eq.s32.totalorder %s48, 0
      %p89 = por %p87, %p88
      %s90 = ssub.s32 %s49, %s61
      %p91 = scmp.eq.s32.totalorder %s90, 0
      %s93 = sadd.s32 %s92, 1
      %s94 = scalar_select %p91, %s92, %s93
      %p97 = pneg %p91
      %p98 = scmp.eq.s32.totalorder %s42, 1
      %p99 = por %p97, %p98
      %p100 = scmp.ne.s32.totalorder %s92, %s95
      %p101 = scmp.eq.s32.totalorder %s42, 0
      %p102 = por %p100, %p101
      %p103 = scmp.ne.s32.totalorder %s92, %s95
      %p104 = scmp.eq.s32.totalorder %s47, 1
      %p105 = por %p103, %p104
      %p106 = scmp.ne.s32.totalorder %s95, %s96
      %p107 = scmp.eq.s32.totalorder %s47, 0
      %p108 = por %p106, %p107
      %p109 = scmp.ne.s32.totalorder %s95, %s96
      %p110 = scmp.eq.s32.totalorder %s48, 1
      %p111 = por %p109, %p110
      %p113 = scmp.ne.s32.totalorder %s96, %s112
      %p114 = scmp.eq.s32.totalorder %s48, 0
      %p115 = por %p113, %p114
      %s117 = sadd.s32 %s116, 1
      %p120 = scmp.eq.s32.totalorder %s42, 1
      %p121 = scmp.ne.s32.totalorder %s116, %s118
      %p122 = scmp.eq.s32.totalorder %s42, 0
      %p123 = por %p121, %p122
      %p124 = scmp.ne.s32.totalorder %s116, %s118
      %p125 = scmp.eq.s32.totalorder %s47, 1
      %p126 = por %p124, %p125
      %p127 = scmp.ne.s32.totalorder %s118, %s119
      %p128 = scmp.eq.s32.totalorder %s47, 0
      %p129 = por %p127, %p128
      %p130 = scmp.ne.s32.totalorder %s118, %s119
      %p131 = scmp.eq.s32.totalorder %s48, 1
      %p132 = por %p130, %p131
      %p134 = scmp.ne.s32.totalorder %s119, %s133
      %p135 = scmp.eq.s32.totalorder %s48, 0
      %p136 = por %p134, %p135
      %s138 = sadd.s32 %s137, 1
      %p141 = scmp.eq.s32.totalorder %s42, 1
      %p142 = scmp.ne.s32.totalorder %s137, %s139
      %p143 = scmp.eq.s32.totalorder %s42, 0
      %p144 = por %p142, %p143
      %p145 = scmp.ne.s32.totalorder %s137, %s139
      %p146 = scmp.eq.s32.totalorder %s47, 1
      %p147 = por %p145, %p146
      %p148 = scmp.ne.s32.totalorder %s139, %s140
      %p149 = scmp.eq.s32.totalorder %s47, 0
      %p150 = por %p148, %p149
      %p151 = scmp.ne.s32.totalorder %s139, %s140
      %p152 = scmp.eq.s32.totalorder %s48, 1
      %p153 = por %p151, %p152
      %p155 = scmp.ne.s32.totalorder %s140, %s154
      %p156 = scmp.eq.s32.totalorder %s48, 0
      %p157 = por %p155, %p156
      %s159 = sadd.s32 %s158, 1
      %p162 = scmp.eq.s32.totalorder %s42, 1
      %p163 = scmp.ne.s32.totalorder %s158, %s160
      %p164 = scmp.eq.s32.totalorder %s42, 0
      %p165 = por %p163, %p164
      %p166 = scmp.ne.s32.totalorder %s158, %s160
      %p167 = scmp.eq.s32.totalorder %s47, 1
      %p168 = por %p166, %p167
      %p169 = scmp.ne.s32.totalorder %s160, %s161
      %p170 = scmp.eq.s32.totalorder %s47, 0
      %p171 = por %p169, %p170
      %p172 = scmp.ne.s32.totalorder %s160, %s161
      %p173 = scmp.eq.s32.totalorder %s48, 1
      %p174 = por %p172, %p173
      %p176 = scmp.ne.s32.totalorder %s161, %s175
      %p177 = scmp.eq.s32.totalorder %s48, 0
      %p178 = por %p176, %p177
      %s180 = sadd.s32 %s179, 1
      %p183 = scmp.eq.s32.totalorder %s42, 1
      %p184 = scmp.ne.s32.totalorder %s179, %s181
      %p185 = scmp.eq.s32.totalorder %s42, 0
      %p186 = por %p184, %p185
      %p187 = scmp.ne.s32.totalorder %s179, %s181
      %p188 = scmp.eq.s32.totalorder %s47, 1
      %p189 = por %p187, %p188
      %p190 = scmp.ne.s32.totalorder %s181, %s182
      %p191 = scmp.eq.s32.totalorder %s47, 0
      %p192 = por %p190, %p191
      %p193 = scmp.ne.s32.totalorder %s181, %s182
      %p194 = scmp.eq.s32.totalorder %s48, 1
      %p195 = por %p193, %p194
      %p197 = scmp.ne.s32.totalorder %s182, %s196
      %p198 = scmp.eq.s32.totalorder %s48, 0
      %p199 = por %p197, %p198
      %s201 = sadd.s32 %s200, 1
      %p204 = scmp.eq.s32.totalorder %s42, 1
      %p205 = scmp.ne.s32.totalorder %s200, %s202
      %p206 = scmp.eq.s32.totalorder %s42, 0
      %p207 = por %p205, %p206
      %p208 = scmp.ne.s32.totalorder %s200, %s202
      %p209 = scmp.eq.s32.totalorder %s47, 1
      %p210 = por %p208, %p209
      %p211 = scmp.ne.s32.totalorder %s202, %s203
      %p212 = scmp.eq.s32.totalorder %s47, 0
      %p213 = por %p211, %p212
      %p214 = scmp.ne.s32.totalorder %s202, %s203
      %p215 = scmp.eq.s32.totalorder %s48, 1
      %p216 = por %p214, %p215
      %p218 = scmp.ne.s32.totalorder %s203, %s217
      %p219 = scmp.eq.s32.totalorder %s48, 0
      %p220 = por %p218, %p219
      %s222 = sadd.s32 %s221, 1
      %p225 = scmp.eq.s32.totalorder %s42, 1
      %p226 = scmp.ne.s32.totalorder %s221, %s223
      %p227 = scmp.eq.s32.totalorder %s42, 0
      %p228 = por %p226, %p227
      %p229 = scmp.ne.s32.totalorder %s221, %s223
      %p230 = scmp.eq.s32.totalorder %s47, 1
      %p231 = por %p229, %p230
      %p232 = scmp.ne.s32.totalorder %s223, %s224
      %p233 = scmp.eq.s32.totalorder %s47, 0
      %p234 = por %p232, %p233
      %p235 = scmp.ne.s32.totalorder %s223, %s224
      %p236 = scmp.eq.s32.totalorder %s48, 1
      %p237 = por %p235, %p236
      %p239 = scmp.ne.s32.totalorder %s224, %s238
      %p240 = scmp.eq.s32.totalorder %s48, 0
      %p241 = por %p239, %p240
      %s243 = sadd.s32 %s242, 1
      %p246 = scmp.eq.s32.totalorder %s42, 1
      %p247 = scmp.ne.s32.totalorder %s242, %s244
      %p248 = scmp.eq.s32.totalorder %s42, 0
      %p249 = por %p247, %p248
      %p250 = scmp.ne.s32.totalorder %s242, %s244
      %p251 = scmp.eq.s32.totalorder %s47, 1
      %p252 = por %p250, %p251
      %p253 = scmp.ne.s32.totalorder %s244, %s245
      %p254 = scmp.eq.s32.totalorder %s47, 0
      %p255 = por %p253, %p254
      %p256 = scmp.ne.s32.totalorder %s244, %s245
      %p257 = scmp.eq.s32.totalorder %s48, 1
      %p258 = por %p256, %p257
      %p260 = scmp.ne.s32.totalorder %s245, %s259
      %p261 = scmp.eq.s32.totalorder %s48, 0
      %p262 = por %p260, %p261
      %s264 = sadd.s32 %s263, 1
      %p267 = scmp.eq.s32.totalorder %s42, 1
      %p268 = scmp.ne.s32.totalorder %s263, %s265
      %p269 = scmp.eq.s32.totalorder %s42, 0
      %p270 = por %p268, %p269
      %p271 = scmp.ne.s32.totalorder %s263, %s265
      %p272 = scmp.eq.s32.totalorder %s47, 1
      %p273 = por %p271, %p272
      %p274 = scmp.ne.s32.totalorder %s265, %s266
      %p275 = scmp.eq.s32.totalorder %s47, 0
      %p276 = por %p274, %p275
      %p277 = scmp.ne.s32.totalorder %s265, %s266
      %p278 = scmp.eq.s32.totalorder %s48, 1
      %p279 = por %p277, %p278
      %p281 = scmp.ne.s32.totalorder %s266, %s280
      %p282 = scmp.eq.s32.totalorder %s48, 0
      %p283 = por %p281, %p282
      %s285 = sadd.s32 %s284, 1
      %p288 = scmp.eq.s32.totalorder %s42, 1
      %p289 = scmp.ne.s32.totalorder %s284, %s286
      %p290 = scmp.eq.s32.totalorder %s42, 0
      %p291 = por %p289, %p290
      %p292 = scmp.ne.s32.totalorder %s284, %s286
      %p293 = scmp.eq.s32.totalorder %s47, 1
      %p294 = por %p292, %p293
      %p295 = scmp.ne.s32.totalorder %s286, %s287
      %p296 = scmp.eq.s32.totalorder %s47, 0
      %p297 = por %p295, %p296
      %p298 = scmp.ne.s32.totalorder %s286, %s287
      %p299 = scmp.eq.s32.totalorder %s48, 1
      %p300 = por %p298, %p299
      %p302 = scmp.ne.s32.totalorder %s287, %s301
      %p303 = scmp.eq.s32.totalorder %s48, 0
      %p304 = por %p302, %p303
      %s306 = sadd.s32 %s305, 1
      %p309 = scmp.eq.s32.totalorder %s42, 1
      %p310 = scmp.ne.s32.totalorder %s305, %s307
      %p311 = scmp.eq.s32.totalorder %s42, 0
      %p312 = por %p310, %p311
      %p313 = scmp.ne.s32.totalorder %s305, %s307
      %p314 = scmp.eq.s32.totalorder %s47, 1
      %p315 = por %p313, %p314
      %p316 = scmp.ne.s32.totalorder %s307, %s308
      %p317 = scmp.eq.s32.totalorder %s47, 0
      %p318 = por %p316, %p317
      %p319 = scmp.ne.s32.totalorder %s307, %s308
      %p320 = scmp.eq.s32.totalorder %s48, 1
      %p321 = por %p319, %p320
      %p323 = scmp.ne.s32.totalorder %s308, %s322
      %p324 = scmp.eq.s32.totalorder %s48, 0
      %p325 = por %p323, %p324
      %s326 = ssub.s32 %s49, %s61
      %s327 = ssub.s32 %s50, %s57
      %s328 = sor.u32 %s326, %s327
      %p329 = scmp.eq.s32.totalorder %s328, 0
      %s331 = sadd.s32 %s330, 1
      %s332 = scalar_select %p329, %s330, %s331
      %p335 = pneg %p329
      %p336 = scmp.eq.s32.totalorder %s42, 1
      %p337 = por %p335, %p336
      %p338 = scmp.ne.s32.totalorder %s330, %s333
      %p339 = scmp.eq.s32.totalorder %s42, 0
      %p340 = por %p338, %p339
      %p341 = scmp.ne.s32.totalorder %s330, %s333
      %p342 = scmp.eq.s32.totalorder %s47, 1
      %p343 = por %p341, %p342
      %p344 = scmp.ne.s32.totalorder %s333, %s334
      %p345 = scmp.eq.s32.totalorder %s47, 0
      %p346 = por %p344, %p345
      %p347 = scmp.ne.s32.totalorder %s333, %s334
      %p348 = scmp.eq.s32.totalorder %s48, 1
      %p349 = por %p347, %p348
      %p351 = scmp.ne.s32.totalorder %s334, %s350
      %p352 = scmp.eq.s32.totalorder %s48, 0
      %p353 = por %p351, %p352
      %s354 = ssub.s32 %s49, %s61
      %s355 = ssub.s32 %s50, %s57
      %s356 = sor.u32 %s354, %s355
      %p357 = scmp.eq.s32.totalorder %s356, 0
      %s359 = sadd.s32 %s358, 1
      %s360 = scalar_select %p357, %s358, %s359
      %p363 = pneg %p357
      %p364 = scmp.eq.s32.totalorder %s42, 1
      %p365 = por %p363, %p364
      %p366 = scmp.ne.s32.totalorder %s358, %s361
      %p367 = scmp.eq.s32.totalorder %s42, 0
      %p368 = por %p366, %p367
      %p369 = scmp.ne.s32.totalorder %s358, %s361
      %p370 = scmp.eq.s32.totalorder %s47, 1
      %p371 = por %p369, %p370
      %p372 = scmp.ne.s32.totalorder %s361, %s362
      %p373 = scmp.eq.s32.totalorder %s47, 0
      %p374 = por %p372, %p373
      %p375 = scmp.ne.s32.totalorder %s361, %s362
      %p376 = scmp.eq.s32.totalorder %s48, 1
      %p377 = por %p375, %p376
      %p379 = scmp.ne.s32.totalorder %s362, %s378
      %p380 = scmp.eq.s32.totalorder %s48, 0
      %p381 = por %p379, %p380
      %p382 = scmp.le.s32.totalorder 1, %s42
      %p383 = scmp.lt.s32.totalorder %s42, 3
      %p384 = pnand %p382, %p383
      %p385 = pneg %p384
      // Predicated region
      $region9: #{tpu_custom_call.1} parent=5 // pred_check
        _
      $region10: #{tpu_custom_call.1} parent=5 // pred_check_branch
        %387 = sbr.rel (%p384) target = $region12
      $region11: #{tpu_custom_call.1} parent=5 // pred_region
        %s388 = ssub.s32 %s42, 1
        // Predicated region
        $region13: #{tpu_custom_call.1} parent=11 // pred_check
          %p389 = pneg %p129
        $region14: #{tpu_custom_call.1} parent=11 // pred_check_branch
          %391 = sbr.rel (%p389) target = $region16
        $region15: #{tpu_custom_call.1} parent=11 // pred_region
          %393 = vsyncadd [#allocation8], 0
          %s394 = sshll.u32 %s3, 4
          %s395 = int_to_ptr.hbm [resolvable:$true] %s394
          %s396 = sshll.u32 [#allocation9], 4
          %s397 = int_to_ptr.vmem [resolvable:$true] %s396
          %402 = dma.hbm_to_vmem [thread:$0]  %s395, 512, %s397, [#allocation8], 128, 128, 8
        $region16: #{tpu_custom_call.1} parent=11 // pred_fallthru
          _
        // Predicated region
        $region17: #{tpu_custom_call.1} parent=11 // pred_check
          %p403 = pneg %p150
        $region18: #{tpu_custom_call.1} parent=11 // pred_check_branch
          %405 = sbr.rel (%p403) target = $region20
        $region19: #{tpu_custom_call.1} parent=11 // pred_region
          _
        $region20: #{tpu_custom_call.1} parent=11 // pred_fallthru
          _
        // Predicated region
        $region21: #{tpu_custom_call.1} parent=11 // pred_check
          %p406 = pneg %p171
        $region22: #{tpu_custom_call.1} parent=11 // pred_check_branch
          %408 = sbr.rel (%p406) target = $region24
        $region23: #{tpu_custom_call.1} parent=11 // pred_region
          %410 = vsyncadd [#allocation11], 0
          %s411 = sshll.u32 %s5, 4
          %s412 = int_to_ptr.hbm [resolvable:$true] %s411
          %s413 = sshll.u32 [#allocation10], 4
          %s414 = int_to_ptr.vmem [resolvable:$true] %s413
          %419 = dma.hbm_to_vmem [thread:$0]  %s412, 512, %s414, [#allocation11], 128, 128, 8
        $region24: #{tpu_custom_call.1} parent=11 // pred_fallthru
          _
        // Predicated region
        $region25: #{tpu_custom_call.1} parent=11 // pred_check
          %p420 = pneg %p192
        $region26: #{tpu_custom_call.1} parent=11 // pred_check_branch
          %422 = sbr.rel (%p420) target = $region28
        $region27: #{tpu_custom_call.1} parent=11 // pred_region
          _
        $region28: #{tpu_custom_call.1} parent=11 // pred_fallthru
          _
        // Predicated region
        $region29: #{tpu_custom_call.1} parent=11 // pred_check
          %p423 = pneg %p213
        $region30: #{tpu_custom_call.1} parent=11 // pred_check_branch
          %425 = sbr.rel (%p423) target = $region32
        $region31: #{tpu_custom_call.1} parent=11 // pred_region
          %427 = vsyncadd [#allocation11], 0
          %s428 = sshll.u32 %s7, 4
          %s429 = int_to_ptr.hbm [resolvable:$true] %s428
          %s430 = sshll.u32 [#allocation12], 4
          %s431 = int_to_ptr.vmem [resolvable:$true] %s430
          %436 = dma.hbm_to_vmem [thread:$0]  %s429, 512, %s431, [#allocation11], 128, 128, 8
        $region32: #{tpu_custom_call.1} parent=11 // pred_fallthru
          _
        // Predicated region
        $region33: #{tpu_custom_call.1} parent=11 // pred_check
          %p437 = pneg %p234
        $region34: #{tpu_custom_call.1} parent=11 // pred_check_branch
          %439 = sbr.rel (%p437) target = $region36
        $region35: #{tpu_custom_call.1} parent=11 // pred_region
          _
        $region36: #{tpu_custom_call.1} parent=11 // pred_fallthru
          _
        // Predicated region
        $region37: #{tpu_custom_call.1} parent=11 // pred_check
          %p440 = pneg %p255
        $region38: #{tpu_custom_call.1} parent=11 // pred_check_branch
          %442 = sbr.rel (%p440) target = $region40
        $region39: #{tpu_custom_call.1} parent=11 // pred_region
          _
        $region40: #{tpu_custom_call.1} parent=11 // pred_fallthru
          _
        // Predicated region
        $region41: #{tpu_custom_call.1} parent=11 // pred_check
          %p443 = pneg %p276
        $region42: #{tpu_custom_call.1} parent=11 // pred_check_branch
          %445 = sbr.rel (%p443) target = $region44
        $region43: #{tpu_custom_call.1} parent=11 // pred_region
          _
        $region44: #{tpu_custom_call.1} parent=11 // pred_fallthru
          _
        // Predicated region
        $region45: #{tpu_custom_call.1} parent=11 // pred_check
          %p446 = pneg %p297
        $region46: #{tpu_custom_call.1} parent=11 // pred_check_branch
          %448 = sbr.rel (%p446) target = $region48
        $region47: #{tpu_custom_call.1} parent=11 // pred_region
          _
        $region48: #{tpu_custom_call.1} parent=11 // pred_fallthru
          _
        // Predicated region
        $region49: #{tpu_custom_call.1} parent=11 // pred_check
          %p449 = pneg %p318
        $region50: #{tpu_custom_call.1} parent=11 // pred_check_branch
          %451 = sbr.rel (%p449) target = $region52
        $region51: #{tpu_custom_call.1} parent=11 // pred_region
          _
        $region52: #{tpu_custom_call.1} parent=11 // pred_fallthru
          _
      $region12: #{tpu_custom_call.1} parent=5 // pred_fallthru
        _
      %p452 = scmp.lt.s32.totalorder %s42, 2
      // Predicated region
      $region53: #{tpu_custom_call.1} parent=5 // pred_check
        %p453 = pneg %p452
      $region54: #{tpu_custom_call.1} parent=5 // pred_check_branch
        %455 = sbr.rel (%p453) target = $region56
      $region55: #{tpu_custom_call.1} parent=5 // pred_region
        // Predicated region
        $region57: #{tpu_custom_call.1} parent=55 // pred_check
          %p456 = pneg %p76
        $region58: #{tpu_custom_call.1} parent=55 // pred_check_branch
          %458 = sbr.rel (%p456) target = $region60
        $region59: #{tpu_custom_call.1} parent=55 // pred_region
          %s459 = sand.u32 %s66, 1
          %s460 = scalar_lea.sflag [#allocation5], %s459
          %s461 = sand.u32 %s66, 1
          %s462 = smul.addr %s461, 8
          %s463 = scalar_lea.vmem [#allocation4], %s462
          %465 = vsyncadd %s460, 0
          %s466 = sadd.s32 %s50, %s49
          %s467 = smul.addr %s466, 8
          %s468 = scalar_lea.hbm %s1, %s467
          %s470 = sshll.u32 %s468, 4
          %s471 = int_to_ptr.hbm [resolvable:$true] %s470
          %s472 = sshll.u32 %s463, 4
          %s473 = int_to_ptr.vmem [resolvable:$true] %s472
          %475 = dma.hbm_to_vmem [thread:$0]  %s471, 128, %s473, %s460
        $region60: #{tpu_custom_call.1} parent=55 // pred_fallthru
          _
        // Predicated region
        $region61: #{tpu_custom_call.1} parent=55 // pred_check
          %p476 = pneg %p102
        $region62: #{tpu_custom_call.1} parent=55 // pred_check_branch
          %478 = sbr.rel (%p476) target = $region64
        $region63: #{tpu_custom_call.1} parent=55 // pred_region
          %s479 = sand.u32 %s42, 1
          %s480 = scalar_lea.sflag [#allocation8], %s479
          %s481 = sand.u32 %s92, 1
          %s482 = smul.addr %s481, 8
          %s483 = scalar_lea.vmem [#allocation7], %s482
          %485 = vsyncadd %s480, 0
          %s486 = smul.addr %s49, 8
          %s487 = scalar_lea.hbm %s2, %s486
          %s489 = sshll.u32 %s487, 4
          %s490 = int_to_ptr.hbm [resolvable:$true] %s489
          %s491 = sshll.u32 %s483, 4
          %s492 = int_to_ptr.vmem [resolvable:$true] %s491
          %494 = dma.hbm_to_vmem [thread:$0]  %s490, 128, %s492, %s480
        $region64: #{tpu_custom_call.1} parent=55 // pred_fallthru
          _
      $region56: #{tpu_custom_call.1} parent=5 // pred_fallthru
        _
      %p495 = scmp.le.s32.totalorder 1, %s42
      %p496 = scmp.lt.s32.totalorder %s42, 3
      %p497 = pnand %p495, %p496
      %p498 = pneg %p497
      // Predicated region
      $region65: #{tpu_custom_call.1} parent=5 // pred_check
        _
      $region66: #{tpu_custom_call.1} parent=5 // pred_check_branch
        %500 = sbr.rel (%p497) target = $region68
      $region67: #{tpu_custom_call.1} parent=5 // pred_region
        %s501 = ssub.s32 %s42, 1
        %s502 = sand.u32 %s69, 1
        %s503 = scalar_lea.sflag [#allocation5], %s502
        %s504 = sand.u32 %s69, 1
        %s505 = smul.addr %s504, 8
        %s506 = scalar_lea.vmem [#allocation4], %s505
        // Predicated region
        $region69: #{tpu_custom_call.1} parent=67 // pred_check
          %p507 = pneg %p82
        $region70: #{tpu_custom_call.1} parent=67 // pred_check_branch
          %509 = sbr.rel (%p507) target = $region72
        $region71: #{tpu_custom_call.1} parent=67 // pred_region
          %511 = dma.done %s503, 128
        $region72: #{tpu_custom_call.1} parent=67 // pred_fallthru
          _
        %s512 = sand.u32 %s47, 1
        %s513 = scalar_lea.sflag [#allocation8], %s512
        %s514 = sand.u32 %s95, 1
        %s515 = smul.addr %s514, 8
        %s516 = scalar_lea.vmem [#allocation7], %s515
        // Predicated region
        $region73: #{tpu_custom_call.1} parent=67 // pred_check
          %p517 = pneg %p108
        $region74: #{tpu_custom_call.1} parent=67 // pred_check_branch
          %519 = sbr.rel (%p517) target = $region76
        $region75: #{tpu_custom_call.1} parent=67 // pred_region
          %521 = dma.done %s513, 128
        $region76: #{tpu_custom_call.1} parent=67 // pred_fallthru
          _
        // Predicated region
        $region77: #{tpu_custom_call.1} parent=67 // pred_check
          %p522 = pneg %p129
        $region78: #{tpu_custom_call.1} parent=67 // pred_check_branch
          %524 = sbr.rel (%p522) target = $region80
        $region79: #{tpu_custom_call.1} parent=67 // pred_region
          %526 = dma.done [#allocation8], 512
        $region80: #{tpu_custom_call.1} parent=67 // pred_fallthru
          _
        // Predicated region
        $region81: #{tpu_custom_call.1} parent=67 // pred_check
          %p527 = pneg %p171
        $region82: #{tpu_custom_call.1} parent=67 // pred_check_branch
          %529 = sbr.rel (%p527) target = $region84
        $region83: #{tpu_custom_call.1} parent=67 // pred_region
          %531 = dma.done [#allocation11], 512
        $region84: #{tpu_custom_call.1} parent=67 // pred_fallthru
          _
        // Predicated region
        $region85: #{tpu_custom_call.1} parent=67 // pred_check
          %p532 = pneg %p213
        $region86: #{tpu_custom_call.1} parent=67 // pred_check_branch
          %534 = sbr.rel (%p532) target = $region88
        $region87: #{tpu_custom_call.1} parent=67 // pred_region
          %536 = dma.done [#allocation11], 512
        $region88: #{tpu_custom_call.1} parent=67 // pred_fallthru
          _
        %s537 = sand.u32 %s69, 1
        %s538 = scalar_lea.sflag [#allocation5], %s537
        %s539 = sand.u32 %s69, 1
        %s540 = smul.addr %s539, 8
        %s541 = scalar_lea.vmem [#allocation4], %s540
        %p542 = pneg %p82
        %p543 = pneg %p79
        %s544 = sand.u32 %s47, 1
        %s545 = scalar_lea.sflag [#allocation8], %s544
        %s546 = sand.u32 %s95, 1
        %s547 = smul.addr %s546, 8
        %s548 = scalar_lea.vmem [#allocation7], %s547
        %p549 = pneg %p108
        %p550 = pneg %p105
        %p551 = pneg %p129
        %p552 = pneg %p126
        %p553 = pneg %p150
        %p554 = pneg %p147
        %p555 = pneg %p171
        %p556 = pneg %p168
        %p557 = pneg %p192
        %p558 = pneg %p189
        %p559 = pneg %p213
        %p560 = pneg %p210
        %p561 = pneg %p234
        %p562 = pneg %p231
        %p563 = pneg %p255
        %p564 = pneg %p252
        %p565 = pneg %p276
        %p566 = pneg %p273
        %p567 = pneg %p297
        %p568 = pneg %p294
        %p569 = pneg %p318
        %p570 = pneg %p315
        %p571 = pneg %p346
        %p572 = pneg %p343
        %s573 = sand.u32 %s333, 1
        %s574 = scalar_lea.sflag [#allocation6], %s573
        %s575 = sand.u32 %s333, 1
        %s576 = smul.addr %s575, 8
        %s577 = scalar_lea.vmem [#allocation13], %s576
        %p578 = pneg %p374
        %p579 = pneg %p371
        %s580 = sand.u32 %s361, 1
        %s581 = scalar_lea.sflag [#allocation15], %s580
        %s582 = sand.u32 %s361, 1
        %s583 = smul.addr %s582, 8
        %s584 = scalar_lea.vmem [#allocation14], %s583
        %s585 = smul.u32 %s52, 8
        %v586 = vld [vmem:[%s506] sm:$0xff]
        %v587 = vld [vmem:[%s9] sm:$0x1]
        %v588 = vld [vmem:[%s10] sm:$0x1]
        %vm589 = vcmask 261120
        %v590 = vsel %vm589, %v586, 0.0
        %591 = vadd.xlane.f32.xlu0 %v590
        %v592 = vpop.xlane.xlu0 %591
        %v593 = vrcp.pop 32.0
        %v594 = vmul.f32 32.0, %v593
        %v595 = vsub.f32 1.0, %v594
        %v596 = vmul.f32 %v593, %v595
        %v597 = vadd.f32 %v593, %v596
        %vm598 = vweird.f32 %v593
        %v599 = vsel %vm598, %v593, %v597
        %v600 = vmul.f32 %v592, %v599
        %v601 = vsub.f32 %v586, %v600
        %v602 = vmul.f32 %v601, %v601
        %v603 = vsel %vm589, %v602, 0.0
        %604 = vadd.xlane.f32.xlu0 %v603
        %v605 = vpop.xlane.xlu0 %604
        %v606 = vmul.f32 %v605, %v599
        %v607 = vadd.f32 %v606, 1e-05
        %v608 = vrsqrt.pop %v607
        %v609 = vmul.f32 %v608, %v607
        %v610 = vmul.f32 %v609, %v608
        %v611 = vmul.f32 0.5, %v610
        %v612 = vsub.f32 1.5, %v611
        %v613 = vmul.f32 %v608, %v612
        %vm614 = vweird.f32 %v607
        %vm615 = vweird.f32 %v608
        %vm616 = vmor %vm614, %vm615
        %v617 = vsel %vm616, %v608, %v613
        %v618 = vmul.f32 %v601, %v617
        %v620 = vperm.slane %v587, 0
        %v622 = vmul.f32 %v618, %v620
        %v624 = vperm.slane %v588, 0
        %v626 = vadd.f32 %v622, %v624
        %v627 = vld [vmem:[#allocation9] sm:$0xff]
        %v628 = vld [vmem:[#allocation9 + $0x8] sm:$0xff]
        %v629 = vld [vmem:[#allocation9 + $0x10] sm:$0xff]
        %v630 = vld [vmem:[#allocation9 + $0x18] sm:$0xff]
        %v631 = vld [vmem:[%s4] sm:$0x1]
        %v633 = vperm.slane %v631, 0
        %v636 = vsel %vm589, %v626, 0
        %638 = vmatpush.msra.mxu0 0.0
        %639 = vmatpush.msra.mxu0 0.0
        %640 = vmatpush.msra.mxu0 0.0
        %641 = vmatpush.msra.mxu0 0.0
        %642 = vmatpush.msra.mxu0 0.0
        %643 = vmatpush.msra.mxu0 0.0
        %644 = vmatpush.msra.mxu0 0.0
        %645 = vmatpush.msra.mxu0 0.0
        %646 = vmatpush.msra.mxu0 0.0
        %647 = vmatpush.msra.mxu0 0.0
        %648 = vmatpush.msra.mxu0 0.0
        %649 = vmatpush.msra.mxu0 0.0
        %650 = vmatpush.msra.mxu0 %v630
        %651 = vmatpush.msra.mxu0 %v629
        %652 = vmatpush.msra.mxu0 %v628
        %653 = vmatpush.msra.mxu0 %v627
        %654 = vmatmul.f32.gmra.mxu0 %v636
        %v655 = vpop.f32.mrf.mxu0
        %v656 = vadd.f32 %v633, %v655
        %657 = vdwg.mxu0
        %v658 = vld [vmem:[%s516] sm:$0xff]
        %v659 = vsel %vm589, %v658, 0.0
        %660 = vadd.xlane.f32.xlu0 %v659
        %v661 = vpop.xlane.xlu0 %660
        %v662 = vmul.f32 %v661, %v599
        %v663 = vsub.f32 %v658, %v662
        %v664 = vmul.f32 %v663, %v663
        %v665 = vsel %vm589, %v664, 0.0
        %666 = vadd.xlane.f32.xlu0 %v665
        %v667 = vpop.xlane.xlu0 %666
        %v668 = vmul.f32 %v667, %v599
        %v669 = vadd.f32 %v668, 1e-05
        %v670 = vrsqrt.pop %v669
        %v671 = vmul.f32 %v670, %v669
        %v672 = vmul.f32 %v671, %v670
        %v673 = vmul.f32 0.5, %v672
        %v674 = vsub.f32 1.5, %v673
        %v675 = vmul.f32 %v670, %v674
        %vm676 = vweird.f32 %v669
        %vm677 = vweird.f32 %v670
        %vm678 = vmor %vm676, %vm677
        %v679 = vsel %vm678, %v670, %v675
        %v680 = vmul.f32 %v663, %v679
        %v681 = vmul.f32 %v680, %v620
        %v682 = vadd.f32 %v681, %v624
        %v683 = vld [vmem:[#allocation10] sm:$0xff]
        %v684 = vld [vmem:[#allocation10 + $0x8] sm:$0xff]
        %v685 = vld [vmem:[#allocation10 + $0x10] sm:$0xff]
        %v686 = vld [vmem:[#allocation10 + $0x18] sm:$0xff]
        %v687 = vld [vmem:[%s6] sm:$0x1]
        %v689 = vperm.slane %v687, 0
        %v692 = vsel %vm589, %v682, 0
        %694 = vmatpush.msra.mxu0 0.0
        %695 = vmatpush.msra.mxu0 0.0
        %696 = vmatpush.msra.mxu0 0.0
        %697 = vmatpush.msra.mxu0 0.0
        %698 = vmatpush.msra.mxu0 0.0
        %699 = vmatpush.msra.mxu0 0.0
        %700 = vmatpush.msra.mxu0 0.0
        %701 = vmatpush.msra.mxu0 0.0
        %702 = vmatpush.msra.mxu0 0.0
        %703 = vmatpush.msra.mxu0 0.0
        %704 = vmatpush.msra.mxu0 0.0
        %705 = vmatpush.msra.mxu0 0.0
        %706 = vmatpush.msra.mxu0 %v686
        %707 = vmatpush.msra.mxu0 %v685
        %708 = vmatpush.msra.mxu0 %v684
        %709 = vmatpush.msra.mxu0 %v683
        %710 = vmatmul.f32.gmra.mxu0 %v692
        %v711 = vpop.f32.mrf.mxu0
        %v712 = vadd.f32 %v689, %v711
        %713 = vdwg.mxu0
        %s714 = sld [smem:[#allocation3 + %s51]]
        %v715 = vlaneseq
        %v716 = vshrl.u32 %v715, 7
        %v717 = vstv %s585
        %v718 = vadd.s32 %v716, %v717
        %v719 = vlaneseq
        %v720 = vand.u32 %v719, 127
        %v721 = vstv %s714
        %vm722 = vcmp.ge.s32.totalorder %v720, %v721
        %vm723 = vcmp.gt.s32.totalorder %v720, %v718
        %vm724 = vmor %vm722, %vm723
        %v725 = vsel %vm724, -1e+30, 0.0
        %vm726 = vcmask 64512
        %v728 = vsel %vm726, %v656, 0
        %v731 = vsel %vm726, %v712, 0
        %733 = vmatpush.xpose.msra.mxu0 0.0
        %734 = vmatpush.xpose.msra.mxu0 0.0
        %735 = vmatpush.xpose.msra.mxu0 0.0
        %736 = vmatpush.xpose.msra.mxu0 0.0
        %737 = vmatpush.xpose.msra.mxu0 0.0
        %738 = vmatpush.xpose.msra.mxu0 0.0
        %739 = vmatpush.xpose.msra.mxu0 0.0
        %740 = vmatpush.xpose.msra.mxu0 0.0
        %741 = vmatpush.xpose.msra.mxu0 0.0
        %742 = vmatpush.xpose.msra.mxu0 0.0
        %743 = vmatpush.xpose.msra.mxu0 0.0
        %744 = vmatpush.xpose.msra.mxu0 0.0
        %745 = vmatpush.xpose.msra.mxu0 0.0
        %746 = vmatpush.xpose.msra.mxu0 0.0
        %747 = vmatpush.xpose.msra.mxu0 0.0
        %748 = vmatpush.xpose.msra.mxu0 %v731
        %749 = vmatmul.f32.gmra.mxu0 %v728
        %v750 = vpop.f32.mrf.mxu0
        %v751 = vadd.f32 %v725, %v750
        %752 = vdwg.mxu0
        %v753 = vsel %vm726, %v751, -inf
        %754 = vmax.xlane.f32.xlu0 %v753
        %v755 = vpop.xlane.xlu0 %754
        %v756 = vsub.f32 %v751, %v755
        %v757 = vmul.f32 %v756, 1.442695
        %v758 = vpow.pop %v757
        %v759 = vsel %vm726, %v758, 0.0
        %760 = vadd.xlane.f32.xlu0 %v759
        %v761 = vpop.xlane.xlu0 %760
        %v762 = vrcp.pop %v761
        %v763 = vmul.f32 %v758, %v762
        %v764 = vadd.f32 %v763, 0.0
        %765 = vrot.lane.b32.xlu0 %v712, 96
        %v766 = vpop.permute.xlu0 %765
        %v769 = vsel %vm726, %v763, 0
        %771 = vmatpush.msra.mxu0 0.0
        %772 = vmatpush.msra.mxu0 0.0
        %773 = vmatpush.msra.mxu0 0.0
        %774 = vmatpush.msra.mxu0 0.0
        %775 = vmatpush.msra.mxu0 0.0
        %776 = vmatpush.msra.mxu0 0.0
        %777 = vmatpush.msra.mxu0 0.0
        %778 = vmatpush.msra.mxu0 0.0
        %779 = vmatpush.msra.mxu0 0.0
        %780 = vmatpush.msra.mxu0 0.0
        %781 = vmatpush.msra.mxu0 0.0
        %782 = vmatpush.msra.mxu0 0.0
        %783 = vmatpush.msra.mxu0 0.0
        %784 = vmatpush.msra.mxu0 0.0
        %785 = vmatpush.msra.mxu0 0.0
        %786 = vmatpush.msra.mxu0 %v766
        %787 = vmatmul.f32.gmra.mxu0 %v769
        %v788 = vpop.f32.mrf.mxu0
        %v789 = vadd.f32 0.0, %v788
        %790 = vdwg.mxu0
        %791 = vrot.lane.b32.xlu0 %v656, 120
        %v792 = vpop.permute.xlu0 %791
        %793 = vrot.lane.b32.xlu0 %v712, 120
        %v794 = vpop.permute.xlu0 %793
        %v795 = vsel %vm726, %v792, 0
        %v797 = vsel %vm726, %v794, 0
        %799 = vmatpush.xpose.msra.mxu0 0.0
        %800 = vmatpush.xpose.msra.mxu0 0.0
        %801 = vmatpush.xpose.msra.mxu0 0.0
        %802 = vmatpush.xpose.msra.mxu0 0.0
        %803 = vmatpush.xpose.msra.mxu0 0.0
        %804 = vmatpush.xpose.msra.mxu0 0.0
        %805 = vmatpush.xpose.msra.mxu0 0.0
        %806 = vmatpush.xpose.msra.mxu0 0.0
        %807 = vmatpush.xpose.msra.mxu0 0.0
        %808 = vmatpush.xpose.msra.mxu0 0.0
        %809 = vmatpush.xpose.msra.mxu0 0.0
        %810 = vmatpush.xpose.msra.mxu0 0.0
        %811 = vmatpush.xpose.msra.mxu0 0.0
        %812 = vmatpush.xpose.msra.mxu0 0.0
        %813 = vmatpush.xpose.msra.mxu0 0.0
        %814 = vmatpush.xpose.msra.mxu0 %v797
        %815 = vmatmul.f32.gmra.mxu0 %v795
        %v816 = vpop.f32.mrf.mxu0
        %v817 = vadd.f32 %v725, %v816
        %818 = vdwg.mxu0
        %v819 = vsel %vm726, %v817, -inf
        %820 = vmax.xlane.f32.xlu0 %v819
        %v821 = vpop.xlane.xlu0 %820
        %v822 = vsub.f32 %v817, %v821
        %v823 = vmul.f32 %v822, 1.442695
        %v824 = vpow.pop %v823
        %v825 = vsel %vm726, %v824, 0.0
        %826 = vadd.xlane.f32.xlu0 %v825
        %v827 = vpop.xlane.xlu0 %826
        %v828 = vrcp.pop %v827
        %v829 = vmul.f32 %v824, %v828
        %v830 = vadd.f32 %v764, %v829
        %831 = vrot.lane.b32.xlu0 %v712, 88
        %v832 = vpop.permute.xlu0 %831
        %v835 = vsel %vm726, %v829, 0
        %837 = vmatpush.msra.mxu0 0.0
        %838 = vmatpush.msra.mxu0 0.0
        %839 = vmatpush.msra.mxu0 0.0
        %840 = vmatpush.msra.mxu0 0.0
        %841 = vmatpush.msra.mxu0 0.0
        %842 = vmatpush.msra.mxu0 0.0
        %843 = vmatpush.msra.mxu0 0.0
        %844 = vmatpush.msra.mxu0 0.0
        %845 = vmatpush.msra.mxu0 0.0
        %846 = vmatpush.msra.mxu0 0.0
        %847 = vmatpush.msra.mxu0 0.0
        %848 = vmatpush.msra.mxu0 0.0
        %849 = vmatpush.msra.mxu0 0.0
        %850 = vmatpush.msra.mxu0 0.0
        %851 = vmatpush.msra.mxu0 0.0
        %852 = vmatpush.msra.mxu0 %v832
        %853 = vmatmul.f32.gmra.mxu0 %v835
        %v854 = vpop.f32.mrf.mxu0
        %v855 = vadd.f32 0.0, %v854
        %856 = vdwg.mxu0
        %857 = vrot.lane.b32.xlu0 %v656, 112
        %v858 = vpop.permute.xlu0 %857
        %859 = vrot.lane.b32.xlu0 %v712, 112
        %v860 = vpop.permute.xlu0 %859
        %v861 = vsel %vm726, %v858, 0
        %v863 = vsel %vm726, %v860, 0
        %865 = vmatpush.xpose.msra.mxu0 0.0
        %866 = vmatpush.xpose.msra.mxu0 0.0
        %867 = vmatpush.xpose.msra.mxu0 0.0
        %868 = vmatpush.xpose.msra.mxu0 0.0
        %869 = vmatpush.xpose.msra.mxu0 0.0
        %870 = vmatpush.xpose.msra.mxu0 0.0
        %871 = vmatpush.xpose.msra.mxu0 0.0
        %872 = vmatpush.xpose.msra.mxu0 0.0
        %873 = vmatpush.xpose.msra.mxu0 0.0
        %874 = vmatpush.xpose.msra.mxu0 0.0
        %875 = vmatpush.xpose.msra.mxu0 0.0
        %876 = vmatpush.xpose.msra.mxu0 0.0
        %877 = vmatpush.xpose.msra.mxu0 0.0
        %878 = vmatpush.xpose.msra.mxu0 0.0
        %879 = vmatpush.xpose.msra.mxu0 0.0
        %880 = vmatpush.xpose.msra.mxu0 %v863
        %881 = vmatmul.f32.gmra.mxu0 %v861
        %v882 = vpop.f32.mrf.mxu0
        %v883 = vadd.f32 %v725, %v882
        %884 = vdwg.mxu0
        %v885 = vsel %vm726, %v883, -inf
        %886 = vmax.xlane.f32.xlu0 %v885
        %v887 = vpop.xlane.xlu0 %886
        %v888 = vsub.f32 %v883, %v887
        %v889 = vmul.f32 %v888, 1.442695
        %v890 = vpow.pop %v889
        %v891 = vsel %vm726, %v890, 0.0
        %892 = vadd.xlane.f32.xlu0 %v891
        %v893 = vpop.xlane.xlu0 %892
        %v894 = vrcp.pop %v893
        %v895 = vmul.f32 %v890, %v894
        %v896 = vadd.f32 %v830, %v895
        %897 = vrot.lane.b32.xlu0 %v712, 80
        %v898 = vpop.permute.xlu0 %897
        %v901 = vsel %vm726, %v895, 0
        %903 = vmatpush.msra.mxu0 0.0
        %904 = vmatpush.msra.mxu0 0.0
        %905 = vmatpush.msra.mxu0 0.0
        %906 = vmatpush.msra.mxu0 0.0
        %907 = vmatpush.msra.mxu0 0.0
        %908 = vmatpush.msra.mxu0 0.0
        %909 = vmatpush.msra.mxu0 0.0
        %910 = vmatpush.msra.mxu0 0.0
        %911 = vmatpush.msra.mxu0 0.0
        %912 = vmatpush.msra.mxu0 0.0
        %913 = vmatpush.msra.mxu0 0.0
        %914 = vmatpush.msra.mxu0 0.0
        %915 = vmatpush.msra.mxu0 0.0
        %916 = vmatpush.msra.mxu0 0.0
        %917 = vmatpush.msra.mxu0 0.0
        %918 = vmatpush.msra.mxu0 %v898
        %919 = vmatmul.f32.gmra.mxu0 %v901
        %v920 = vpop.f32.mrf.mxu0
        %v921 = vadd.f32 0.0, %v920
        %922 = vdwg.mxu0
        %923 = vrot.lane.b32.xlu0 %v656, 104
        %v924 = vpop.permute.xlu0 %923
        %925 = vrot.lane.b32.xlu0 %v712, 104
        %v926 = vpop.permute.xlu0 %925
        %v927 = vsel %vm726, %v924, 0
        %v929 = vsel %vm726, %v926, 0
        %931 = vmatpush.xpose.msra.mxu0 0.0
        %932 = vmatpush.xpose.msra.mxu0 0.0
        %933 = vmatpush.xpose.msra.mxu0 0.0
        %934 = vmatpush.xpose.msra.mxu0 0.0
        %935 = vmatpush.xpose.msra.mxu0 0.0
        %936 = vmatpush.xpose.msra.mxu0 0.0
        %937 = vmatpush.xpose.msra.mxu0 0.0
        %938 = vmatpush.xpose.msra.mxu0 0.0
        %939 = vmatpush.xpose.msra.mxu0 0.0
        %940 = vmatpush.xpose.msra.mxu0 0.0
        %941 = vmatpush.xpose.msra.mxu0 0.0
        %942 = vmatpush.xpose.msra.mxu0 0.0
        %943 = vmatpush.xpose.msra.mxu0 0.0
        %944 = vmatpush.xpose.msra.mxu0 0.0
        %945 = vmatpush.xpose.msra.mxu0 0.0
        %946 = vmatpush.xpose.msra.mxu0 %v929
        %947 = vmatmul.f32.gmra.mxu0 %v927
        %v948 = vpop.f32.mrf.mxu0
        %v949 = vadd.f32 %v725, %v948
        %950 = vdwg.mxu0
        %v951 = vsel %vm726, %v949, -inf
        %952 = vmax.xlane.f32.xlu0 %v951
        %v953 = vpop.xlane.xlu0 %952
        %v954 = vsub.f32 %v949, %v953
        %v955 = vmul.f32 %v954, 1.442695
        %v956 = vpow.pop %v955
        %v957 = vsel %vm726, %v956, 0.0
        %958 = vadd.xlane.f32.xlu0 %v957
        %v959 = vpop.xlane.xlu0 %958
        %v960 = vrcp.pop %v959
        %v961 = vmul.f32 %v956, %v960
        %v962 = vadd.f32 %v896, %v961
        %963 = vrot.lane.b32.xlu0 %v712, 72
        %v964 = vpop.permute.xlu0 %963
        %v967 = vsel %vm726, %v961, 0
        %969 = vmatpush.msra.mxu0 0.0
        %970 = vmatpush.msra.mxu0 0.0
        %971 = vmatpush.msra.mxu0 0.0
        %972 = vmatpush.msra.mxu0 0.0
        %973 = vmatpush.msra.mxu0 0.0
        %974 = vmatpush.msra.mxu0 0.0
        %975 = vmatpush.msra.mxu0 0.0
        %976 = vmatpush.msra.mxu0 0.0
        %977 = vmatpush.msra.mxu0 0.0
        %978 = vmatpush.msra.mxu0 0.0
        %979 = vmatpush.msra.mxu0 0.0
        %980 = vmatpush.msra.mxu0 0.0
        %981 = vmatpush.msra.mxu0 0.0
        %982 = vmatpush.msra.mxu0 0.0
        %983 = vmatpush.msra.mxu0 0.0
        %984 = vmatpush.msra.mxu0 %v964
        %985 = vmatmul.f32.gmra.mxu0 %v967
        %v986 = vpop.f32.mrf.mxu0
        %v987 = vadd.f32 0.0, %v986
        %988 = vdwg.mxu0
        %990 = vrot.lane.b32.xlu0 %v855, 8
        %v991 = vpop.permute.xlu0 %990
        %994 = vrot.lane.b32.xlu0 %v921, 16
        %v995 = vpop.permute.xlu0 %994
        %998 = vrot.lane.b32.xlu0 %v987, 24
        %v999 = vpop.permute.xlu0 %998
        %v1001 = vsel %vm726, %v789, %v991
        %vm1002 = vcmask 130048
        %v1003 = vsel %vm1002, %v1001, %v995
        %vm1004 = vcmask 195584
        %v1005 = vsel %vm1004, %v1003, %v999
        %v1006 = vld [vmem:[#allocation12] sm:$0xff]
        %v1007 = vld [vmem:[#allocation12 + $0x8] sm:$0xff]
        %v1008 = vld [vmem:[#allocation12 + $0x10] sm:$0xff]
        %v1009 = vld [vmem:[#allocation12 + $0x18] sm:$0xff]
        %v1010 = vld [vmem:[%s8] sm:$0x1]
        %v1012 = vperm.slane %v1010, 0
        %v1015 = vsel %vm589, %v1005, 0
        %1017 = vmatpush.msra.mxu0 0.0
        %1018 = vmatpush.msra.mxu0 0.0
        %1019 = vmatpush.msra.mxu0 0.0
        %1020 = vmatpush.msra.mxu0 0.0
        %1021 = vmatpush.msra.mxu0 0.0
        %1022 = vmatpush.msra.mxu0 0.0
        %1023 = vmatpush.msra.mxu0 0.0
        %1024 = vmatpush.msra.mxu0 0.0
        %1025 = vmatpush.msra.mxu0 0.0
        %1026 = vmatpush.msra.mxu0 0.0
        %1027 = vmatpush.msra.mxu0 0.0
        %1028 = vmatpush.msra.mxu0 0.0
        %1029 = vmatpush.msra.mxu0 %v1009
        %1030 = vmatpush.msra.mxu0 %v1008
        %1031 = vmatpush.msra.mxu0 %v1007
        %1032 = vmatpush.msra.mxu0 %v1006
        %1033 = vmatmul.f32.gmra.mxu0 %v1015
        %v1034 = vpop.f32.mrf.mxu0
        %v1035 = vadd.f32 %v1012, %v1034
        %1036 = vdwg.mxu0
        %v1037 = vadd.f32 %v626, %v1035
        %v1038 = vld [vmem:[%s11] sm:$0x1]
        %v1039 = vld [vmem:[%s12] sm:$0x1]
        %v1040 = vsel %vm589, %v1037, 0.0
        %1041 = vadd.xlane.f32.xlu0 %v1040
        %v1042 = vpop.xlane.xlu0 %1041
        %v1043 = vmul.f32 %v1042, %v599
        %v1044 = vsub.f32 %v1037, %v1043
        %v1045 = vmul.f32 %v1044, %v1044
        %v1046 = vsel %vm589, %v1045, 0.0
        %1047 = vadd.xlane.f32.xlu0 %v1046
        %v1048 = vpop.xlane.xlu0 %1047
        %v1049 = vmul.f32 %v1048, %v599
        %v1050 = vadd.f32 %v1049, 1e-05
        %v1051 = vrsqrt.pop %v1050
        %v1052 = vmul.f32 %v1051, %v1050
        %v1053 = vmul.f32 %v1052, %v1051
        %v1054 = vmul.f32 0.5, %v1053
        %v1055 = vsub.f32 1.5, %v1054
        %v1056 = vmul.f32 %v1051, %v1055
        %vm1057 = vweird.f32 %v1050
        %vm1058 = vweird.f32 %v1051
        %vm1059 = vmor %vm1057, %vm1058
        %v1060 = vsel %vm1059, %v1051, %v1056
        %v1061 = vmul.f32 %v1044, %v1060
        %v1063 = vperm.slane %v1038, 0
        %v1065 = vmul.f32 %v1061, %v1063
        %v1067 = vperm.slane %v1039, 0
        %v1069 = vadd.f32 %v1065, %v1067
        %1070 = vst.msk [vmem:[%s577] sm:$0xff] %vm589, %v1069
        %v1071 = vmul.f32 %v962, 0.25
        %1072 = vst.msk [vmem:[%s584] sm:$0xff] %vm726, %v1071
        %s1073 = sand.u32 %s333, 1
        %s1074 = scalar_lea.sflag [#allocation6], %s1073
        %s1075 = sand.u32 %s333, 1
        %s1076 = smul.addr %s1075, 8
        %s1077 = scalar_lea.vmem [#allocation13], %s1076
        %s1078 = sand.u32 %s361, 1
        %s1079 = scalar_lea.sflag [#allocation15], %s1078
        %s1080 = sand.u32 %s361, 1
        %s1081 = smul.addr %s1080, 8
        %s1082 = scalar_lea.vmem [#allocation14], %s1081
        // Predicated region
        $region89: #{tpu_custom_call.1} parent=67 // pred_check
          %p1083 = pneg %p343
        $region90: #{tpu_custom_call.1} parent=67 // pred_check_branch
          %1085 = sbr.rel (%p1083) target = $region92
        $region91: #{tpu_custom_call.1} parent=67 // pred_region
          %1087 = vsyncadd %s1074, 0
          %s1088 = sadd.s32 %s52, %s51
          %s1089 = smul.addr %s1088, 8
          %s1090 = scalar_lea.hbm %s13, %s1089
          %s1092 = sshll.u32 %s1077, 4
          %s1093 = int_to_ptr.vmem [resolvable:$true] %s1092
          %s1094 = sshll.u32 %s1090, 4
          %s1095 = int_to_ptr.hbm [resolvable:$true] %s1094
          %1097 = dma.vmem_to_hbm [thread:$0]  %s1093, 128, %s1095, %s1074
        $region92: #{tpu_custom_call.1} parent=67 // pred_fallthru
          _
        // Predicated region
        $region93: #{tpu_custom_call.1} parent=67 // pred_check
          %p1098 = pneg %p371
        $region94: #{tpu_custom_call.1} parent=67 // pred_check_branch
          %1100 = sbr.rel (%p1098) target = $region96
        $region95: #{tpu_custom_call.1} parent=67 // pred_region
          %1102 = vsyncadd %s1079, 0
          %s1103 = sadd.s32 %s52, %s51
          %s1104 = smul.addr %s1103, 8
          %s1105 = scalar_lea.hbm %s14, %s1104
          %s1107 = sshll.u32 %s1082, 4
          %s1108 = int_to_ptr.vmem [resolvable:$true] %s1107
          %s1109 = sshll.u32 %s1105, 4
          %s1110 = int_to_ptr.hbm [resolvable:$true] %s1109
          %1112 = dma.vmem_to_hbm [thread:$0]  %s1108, 128, %s1110, %s1079
        $region96: #{tpu_custom_call.1} parent=67 // pred_fallthru
          _
      $region68: #{tpu_custom_call.1} parent=5 // pred_fallthru
        _
      %p1113 = scmp.le.s32.totalorder 2, %s42
      // Predicated region
      $region97: #{tpu_custom_call.1} parent=5 // pred_check
        %p1114 = pneg %p1113
      $region98: #{tpu_custom_call.1} parent=5 // pred_check_branch
        %1116 = sbr.rel (%p1114) target = $region100
      $region99: #{tpu_custom_call.1} parent=5 // pred_region
        %s1117 = ssub.s32 %s42, 2
        // Predicated region
        $region101: #{tpu_custom_call.1} parent=99 // pred_check
          %p1118 = pneg %p349
        $region102: #{tpu_custom_call.1} parent=99 // pred_check_branch
          %1120 = sbr.rel (%p1118) target = $region104
        $region103: #{tpu_custom_call.1} parent=99 // pred_region
          %s1121 = sand.u32 %s334, 1
          %s1122 = scalar_lea.sflag [#allocation6], %s1121
          %s1123 = sand.u32 %s334, 1
          %s1124 = smul.addr %s1123, 8
          %s1125 = scalar_lea.vmem [#allocation13], %s1124
          %1127 = dma.done %s1122, 128
        $region104: #{tpu_custom_call.1} parent=99 // pred_fallthru
          _
        // Predicated region
        $region105: #{tpu_custom_call.1} parent=99 // pred_check
          %p1128 = pneg %p377
        $region106: #{tpu_custom_call.1} parent=99 // pred_check_branch
          %1130 = sbr.rel (%p1128) target = $region108
        $region107: #{tpu_custom_call.1} parent=99 // pred_region
          %s1131 = sand.u32 %s362, 1
          %s1132 = scalar_lea.sflag [#allocation15], %s1131
          %s1133 = sand.u32 %s362, 1
          %s1134 = smul.addr %s1133, 8
          %s1135 = scalar_lea.vmem [#allocation14], %s1134
          %1137 = dma.done %s1132, 128
        $region108: #{tpu_custom_call.1} parent=99 // pred_fallthru
          _
      $region100: #{tpu_custom_call.1} parent=5 // pred_fallthru
        _
    $region6: #{tpu_custom_call.1} parent=1 // loop_footer
      %s46 = sadd.s32 1, %s42
    $region7: #{tpu_custom_call.1} parent=1 // loop_footer_branch
      %41 = sbr.rel target = $region3
    $region8: #{tpu_custom_call.1} parent=1 // loop_exit
      _
    %1138 = vsyncpa [#allocation5], 1
    %s1139 = scalar_lea.sflag [#allocation5], 1
    %1140 = vsyncpa %s1139, 1
    %1141 = vsyncpa [#allocation8], 1
    %s1142 = scalar_lea.sflag [#allocation8], 1
    %1143 = vsyncpa %s1142, 1
    %1144 = vsyncpa [#allocation11], 1
    %1145 = vsyncpa [#allocation6], 1
    %s1146 = scalar_lea.sflag [#allocation6], 1
    %1147 = vsyncpa %s1146, 1
    %1148 = vsyncpa [#allocation15], 1
    %s1149 = scalar_lea.sflag [#allocation15], 1
    %1150 = vsyncpa %s1149, 1

</llo_original>
